<compile_context>
chip_gen: v7x
topology: tpu7x:2x2x1
jax: 0.10.0
libtpu: 0.0.40
codegen_flags: <defaults>
</compile_context>

<pallas_src>
import functools

import jax
import jax.numpy as jnp
from jax.experimental import pallas as pl
from jax.experimental.pallas import tpu as pltpu


# --------------------------------- kernel ------------------------------------
def _attnpool_kernel(x_ref, pos0_ref, possp_ref, wqkv_ref, bqkv_ref,
                     mh_ref, mht_ref, wc_ref, bc_ref, o_ref, *, num_heads):
    """Fused AttentionPool2d forward for one batch element.

    x_ref     : (1, S, C)   spatial tokens (already in (S, C) layout)
    pos0_ref  : (1, C)      positional embedding of the mean token
    possp_ref : (S, C)      positional embeddings of the spatial tokens
    wqkv_ref  : (C, 3C)     fused q/k/v projection weight (x @ W layout)
    bqkv_ref  : (1, 3C)     fused q/k/v bias
    mh_ref    : (C, Hh)     head indicator  M[c, h] = 1 iff lane c belongs to head h
    mht_ref   : (Hh, C)     its transpose
    wc_ref    : (C, Do)     c_proj weight
    bc_ref    : (1, Do)     c_proj bias
    o_ref     : (1, 1, Do)  pooled output
    """
    xt = x_ref[0]                                                   # (S, C)
    S, C = xt.shape
    hd = C // num_heads
    scale = hd ** -0.5

    # mean (query) token + positional embeddings, fp32.
    tok0 = jnp.mean(xt, axis=0, keepdims=True) + pos0_ref[...]      # (1, C)
    tok_sp = xt + possp_ref[...]                                    # (S, C)

    # fused QKV projection: one wide MXU matmul for the S spatial tokens plus one matvec
    # for the mean token.  Q/K/V slices below land on 128-lane aligned boundaries.
    wqkv = wqkv_ref[...]
    bqkv = bqkv_ref[...]
    qkv0 = jnp.dot(tok0, wqkv, preferred_element_type=jnp.float32) + bqkv      # (1, 3C)
    qkv_sp = jnp.dot(tok_sp, wqkv, preferred_element_type=jnp.float32) + bqkv  # (S, 3C)

    q0 = qkv0[:, 0:C]            # only the mean-token query is needed (module returns x[0])
    k0 = qkv0[:, C:2 * C]
    v0 = qkv0[:, 2 * C:3 * C]
    k_sp = qkv_sp[:, C:2 * C]
    v_sp = qkv_sp[:, 2 * C:3 * C]

    mh = mh_ref[...]             # (C, Hh)
    mht = mht_ref[...]           # (Hh, C)

    # per-head scores s[j, h] = <q0_h, k_{j,h}> * scale ; heads stay packed in lanes, the
    # per-head reduction is a (.., C) @ (C, Hh) matmul — no lane slicing / concatenation.
    s0 = jnp.dot(k0 * q0, mh, preferred_element_type=jnp.float32) * scale      # (1, Hh)
    s_sp = jnp.dot(k_sp * q0, mh, preferred_element_type=jnp.float32) * scale  # (S, Hh)

    # numerically stable softmax over all S+1 keys (mean token + spatial tokens).
    m = jnp.maximum(jnp.max(s_sp, axis=0, keepdims=True), s0)                  # (1, Hh)
    p0 = jnp.exp(s0 - m)                                                       # (1, Hh)
    p_sp = jnp.exp(s_sp - m)                                                   # (S, Hh)
    denom = p0 + jnp.sum(p_sp, axis=0, keepdims=True)                          # (1, Hh)
    inv = pl.reciprocal(denom, approx=True)                                    # EUP slot
    p0 = p0 * inv
    p_sp = p_sp * inv

    # context: broadcast each head's probability across its hd lanes via (.., Hh) @ (Hh, C),
    # weight the values, reduce over the key axis.
    ctx = (jnp.dot(p0, mht, preferred_element_type=jnp.float32) * v0
           + jnp.sum(jnp.dot(p_sp, mht, preferred_element_type=jnp.float32) * v_sp,
                     axis=0, keepdims=True))                                   # (1, C)

    # output projection (c_proj): lane-dense (1, Do) store.
    out = jnp.dot(ctx, wc_ref[...], preferred_element_type=jnp.float32) + bc_ref[...]
    o_ref[0] = out.astype(o_ref.dtype)


# ----------------------------- wrapper / pallas_call ---------------------------
def attention_pool_2d(x, params, num_heads):
    """x: (N, C, H, W) with C == embed_dim.  Returns the pooled (N, output_dim) vector."""
    N, C, H, W = x.shape
    S = H * W
    Do = params["wc"].shape[1]
    assert C % num_heads == 0
    hd = C // num_heads

    # Token layout (N, S, C): single tiny XLA transpose; everything else is fused in-kernel.
    tokens = x.reshape(N, C, S).transpose(0, 2, 1)

    # Kernel-side parameter packing (cheap, param-sized XLA ops).
    wqkv = jnp.concatenate([params["wq"], params["wk"], params["wv"]], axis=1)   # (C, 3C)
    bqkv = jnp.concatenate([params["bq"], params["bk"], params["bv"]], axis=1)   # (1, 3C)
    pos0 = params["pos"][0:1]                                                    # (1, C)
    pos_sp = params["pos"][1:]                                                   # (S, C)
    head_id = jnp.arange(C, dtype=jnp.int32) // hd
    m_head = (head_id[:, None] == jnp.arange(num_heads)[None, :]).astype(jnp.float32)  # (C, Hh)
    m_head_t = m_head.T                                                                 # (Hh, C)

    kernel = functools.partial(_attnpool_kernel, num_heads=num_heads)
    out = pl.pallas_call(
        kernel,
        out_shape=jax.ShapeDtypeStruct((N, 1, Do), x.dtype),
        grid=(N,),
        in_specs=[
            pl.BlockSpec((1, S, C), lambda n: (n, 0, 0)),          # per-image token slab
            pl.BlockSpec((1, C), lambda n: (0, 0)),                # pos0
            pl.BlockSpec((S, C), lambda n: (0, 0)),                # pos spatial
            pl.BlockSpec((C, 3 * C), lambda n: (0, 0)),            # fused qkv weight
            pl.BlockSpec((1, 3 * C), lambda n: (0, 0)),            # fused qkv bias
            pl.BlockSpec((C, num_heads), lambda n: (0, 0)),        # head indicator
            pl.BlockSpec((num_heads, C), lambda n: (0, 0)),        # head indicator^T
            pl.BlockSpec((C, Do), lambda n: (0, 0)),               # c_proj weight
            pl.BlockSpec((1, Do), lambda n: (0, 0)),               # c_proj bias
        ],
        out_specs=pl.BlockSpec((1, 1, Do), lambda n: (n, 0, 0)),
        compiler_params=pltpu.CompilerParams(
            dimension_semantics=("parallel",)),                    # v7x: batch across 2 TCs
    )(tokens, pos0, pos_sp, wqkv, bqkv, m_head, m_head_t, params["wc"], params["bc"])
    return out.reshape(N, Do)


# ------------------------------ parameters / reference -------------------------
def init_params(key, spacial_dim, embed_dim, output_dim):
    """Weights stored (in, out) so kernels compute x @ W + b (== torch x @ W.T + b)."""
    S = spacial_dim ** 2
    keys = jax.random.split(key, 9)

    def linear(kw, kb, d_in, d_out):
        bound = 1.0 / (d_in ** 0.5)
        w = jax.random.uniform(kw, (d_in, d_out), jnp.float32, -bound, bound)
        b = jax.random.uniform(kb, (1, d_out), jnp.float32, -bound, bound)
        return w, b

    wq, bq = linear(keys[1], keys[2], embed_dim, embed_dim)
    wk, bk = linear(keys[3], keys[4], embed_dim, embed_dim)
    wv, bv = linear(keys[5], keys[6], embed_dim, embed_dim)
    wc, bc = linear(keys[7], keys[8], embed_dim, output_dim)
    pos = jax.random.normal(keys[0], (S + 1, embed_dim), jnp.float32) / embed_dim ** 0.5
    return dict(pos=pos, wq=wq, bq=bq, wk=wk, bk=bk, wv=wv, bv=bv, wc=wc, bc=bc)


def _ref_forward(x, params, num_heads):
    """Pure-JAX reference: full multi-head self-attention, then row 0 (matches PyTorch)."""
    N, C, H, W = x.shape
    S = H * W
    t = x.reshape(N, C, S).transpose(0, 2, 1)                                   # (N, S, C)
    t = jnp.concatenate([jnp.mean(t, axis=1, keepdims=True), t], axis=1)        # (N, S+1, C)
    t = t + params["pos"][None]
    q = t @ params["wq"] + params["bq"]
    k = t @ params["wk"] + params["bk"]
    v = t @ params["wv"] + params["bv"]
    hd = C // num_heads
    qh = q.reshape(N, S + 1, num_heads, hd)
    kh = k.reshape(N, S + 1, num_heads, hd)
    vh = v.reshape(N, S + 1, num_heads, hd)
    s = jnp.einsum("nqhd,nkhd->nhqk", qh, kh) * (hd ** -0.5)
    p = jax.nn.softmax(s, axis=-1)
    ctx = jnp.einsum("nhqk,nkhd->nqhd", p, vh).reshape(N, S + 1, C)
    out = ctx @ params["wc"] + params["bc"]
    return out[:, 0]                                                            # (N, Do)


# ----------------------------------- main --------------------------------------
if __name__ == "__main__":
    # Small, lane-friendly config: spacial_dim=8 -> 64 spatial tokens (+1 mean token),
    # embed_dim=128, 4 heads (head_dim=32), output_dim=256, batch=2.
    spacial_dim, embed_dim, num_heads, output_dim = 8, 128, 4, 256
    N = 2

    key = jax.random.PRNGKey(0)
    kp, kx = jax.random.split(key)
    params = init_params(kp, spacial_dim, embed_dim, output_dim)
    x = jax.random.normal(kx, (N, embed_dim, spacial_dim, spacial_dim), dtype=jnp.float32)

    out = attention_pool_2d(x, params, num_heads)
    out = jax.block_until_ready(out)

    assert out.shape == (N, output_dim)
    assert jnp.all(jnp.isfinite(out))
    ref = _ref_forward(x, params, num_heads)
    assert jnp.allclose(out, ref, rtol=1e-2, atol=1e-2), float(jnp.max(jnp.abs(out - ref)))
    print("KERNEL_OK")
</pallas_src>

<mosaic_0001>
module attributes {stable_mosaic.version = 11 : i64} {
  func.func @_attnpool_kernel(%arg0: i32, %arg1: memref<1x64x128xf32, #tpu.memory_space<vmem>>, %arg2: memref<1x128xf32, #tpu.memory_space<vmem>>, %arg3: memref<64x128xf32, #tpu.memory_space<vmem>>, %arg4: memref<128x384xf32, #tpu.memory_space<vmem>>, %arg5: memref<1x384xf32, #tpu.memory_space<vmem>>, %arg6: memref<128x4xf32, #tpu.memory_space<vmem>>, %arg7: memref<4x128xf32, #tpu.memory_space<vmem>>, %arg8: memref<128x256xf32, #tpu.memory_space<vmem>>, %arg9: memref<1x256xf32, #tpu.memory_space<vmem>>, %arg10: memref<1x1x256xf32, #tpu.memory_space<vmem>>) attributes {dimension_semantics = [#tpu.dimension_semantics<parallel>], iteration_bounds = array<i64: 2>, scalar_prefetch = 0 : i64, scratch_operands = 0 : i64, tpu.core_type = #tpu.core_type<tc>, window_params = [{transform_indices = @transform_0, window_bounds = array<i64: 1, 64, 128>}, {pipeline_mode = #tpu.pipeline_mode<synchronous>, transform_indices = @transform_1, window_bounds = array<i64: 1, 128>}, {pipeline_mode = #tpu.pipeline_mode<synchronous>, transform_indices = @transform_2, window_bounds = array<i64: 64, 128>}, {pipeline_mode = #tpu.pipeline_mode<synchronous>, transform_indices = @transform_3, window_bounds = array<i64: 128, 384>}, {pipeline_mode = #tpu.pipeline_mode<synchronous>, transform_indices = @transform_4, window_bounds = array<i64: 1, 384>}, {pipeline_mode = #tpu.pipeline_mode<synchronous>, transform_indices = @transform_5, window_bounds = array<i64: 128, 4>}, {pipeline_mode = #tpu.pipeline_mode<synchronous>, transform_indices = @transform_6, window_bounds = array<i64: 4, 128>}, {pipeline_mode = #tpu.pipeline_mode<synchronous>, transform_indices = @transform_7, window_bounds = array<i64: 128, 256>}, {pipeline_mode = #tpu.pipeline_mode<synchronous>, transform_indices = @transform_8, window_bounds = array<i64: 1, 256>}, {transform_indices = @transform_9, window_bounds = array<i64: 1, 1, 256>}]} {
    %c0 = arith.constant 0 : index
    %c0_0 = arith.constant 0 : index
    %c0_1 = arith.constant 0 : index
    %0 = vector.load %arg1[%c0, %c0_0, %c0_1] : memref<1x64x128xf32, #tpu.memory_space<vmem>>, vector<1x64x128xf32>
    %1 = vector.shape_cast %0 : vector<1x64x128xf32> to vector<64x128xf32>
    %cst = arith.constant dense<0.000000e+00> : vector<128xf32>
    %2 = vector.multi_reduction <add>, %1, %cst [0] : vector<64x128xf32> to vector<128xf32>
    %3 = vector.shape_cast %2 : vector<128xf32> to vector<1x128xf32>
    %cst_2 = arith.constant 6.400000e+01 : f32
    %4 = vector.broadcast %cst_2 : f32 to vector<1x128xf32>
    %5 = arith.divf %3, %4 : vector<1x128xf32>
    %c0_3 = arith.constant 0 : index
    %c0_4 = arith.constant 0 : index
    %6 = vector.load %arg2[%c0_3, %c0_4] : memref<1x128xf32, #tpu.memory_space<vmem>>, vector<1x128xf32>
    %7 = arith.addf %5, %6 : vector<1x128xf32>
    %c0_5 = arith.constant 0 : index
    %c0_6 = arith.constant 0 : index
    %8 = vector.load %arg3[%c0_5, %c0_6] : memref<64x128xf32, #tpu.memory_space<vmem>>, vector<64x128xf32>
    %9 = arith.addf %1, %8 : vector<64x128xf32>
    %c0_7 = arith.constant 0 : index
    %c0_8 = arith.constant 0 : index
    %10 = vector.load %arg4[%c0_7, %c0_8] : memref<128x384xf32, #tpu.memory_space<vmem>>, vector<128x384xf32>
    %c0_9 = arith.constant 0 : index
    %c0_10 = arith.constant 0 : index
    %11 = vector.load %arg5[%c0_9, %c0_10] : memref<1x384xf32, #tpu.memory_space<vmem>>, vector<1x384xf32>
    %cst_11 = arith.constant dense<0.000000e+00> : vector<1x384xf32>
    %12 = tpu.matmul %7, %10, %cst_11 {dimension_numbers = #tpu.dot_dimension_numbers<[1], [0], [0], [1], [0, 0, 1, 1], [], []>} : vector<1x128xf32>, vector<128x384xf32>, vector<1x384xf32> -> vector<1x384xf32>
    %13 = arith.addf %12, %11 : vector<1x384xf32>
    %cst_12 = arith.constant dense<0.000000e+00> : vector<64x384xf32>
    %14 = tpu.matmul %9, %10, %cst_12 {dimension_numbers = #tpu.dot_dimension_numbers<[1], [0], [0], [1], [0, 0, 1, 1], [], []>} : vector<64x128xf32>, vector<128x384xf32>, vector<64x384xf32> -> vector<64x384xf32>
    %15 = vector.broadcast %11 : vector<1x384xf32> to vector<64x384xf32>
    %16 = arith.addf %14, %15 : vector<64x384xf32>
    %17 = vector.extract_strided_slice %13 {offsets = [0, 0], sizes = [1, 128], strides = [1, 1]} : vector<1x384xf32> to vector<1x128xf32>
    %18 = vector.extract_strided_slice %13 {offsets = [0, 128], sizes = [1, 128], strides = [1, 1]} : vector<1x384xf32> to vector<1x128xf32>
    %19 = vector.extract_strided_slice %13 {offsets = [0, 256], sizes = [1, 128], strides = [1, 1]} : vector<1x384xf32> to vector<1x128xf32>
    %20 = vector.extract_strided_slice %16 {offsets = [0, 128], sizes = [64, 128], strides = [1, 1]} : vector<64x384xf32> to vector<64x128xf32>
    %21 = vector.extract_strided_slice %16 {offsets = [0, 256], sizes = [64, 128], strides = [1, 1]} : vector<64x384xf32> to vector<64x128xf32>
    %c0_13 = arith.constant 0 : index
    %c0_14 = arith.constant 0 : index
    %22 = vector.load %arg6[%c0_13, %c0_14] : memref<128x4xf32, #tpu.memory_space<vmem>>, vector<128x4xf32>
    %c0_15 = arith.constant 0 : index
    %c0_16 = arith.constant 0 : index
    %23 = vector.load %arg7[%c0_15, %c0_16] : memref<4x128xf32, #tpu.memory_space<vmem>>, vector<4x128xf32>
    %24 = arith.mulf %18, %17 : vector<1x128xf32>
    %cst_17 = arith.constant dense<0.000000e+00> : vector<1x4xf32>
    %25 = tpu.matmul %24, %22, %cst_17 {dimension_numbers = #tpu.dot_dimension_numbers<[1], [0], [0], [1], [0, 0, 1, 1], [], []>} : vector<1x128xf32>, vector<128x4xf32>, vector<1x4xf32> -> vector<1x4xf32>
    %cst_18 = arith.constant 0.176776692 : f32
    %26 = vector.broadcast %cst_18 : f32 to vector<1x4xf32>
    %27 = arith.mulf %25, %26 : vector<1x4xf32>
    %28 = vector.broadcast %17 : vector<1x128xf32> to vector<64x128xf32>
    %29 = arith.mulf %20, %28 : vector<64x128xf32>
    %cst_19 = arith.constant dense<0.000000e+00> : vector<64x4xf32>
    %30 = tpu.matmul %29, %22, %cst_19 {dimension_numbers = #tpu.dot_dimension_numbers<[1], [0], [0], [1], [0, 0, 1, 1], [], []>} : vector<64x128xf32>, vector<128x4xf32>, vector<64x4xf32> -> vector<64x4xf32>
    %cst_20 = arith.constant 0.176776692 : f32
    %31 = vector.broadcast %cst_20 : f32 to vector<64x4xf32>
    %32 = arith.mulf %30, %31 : vector<64x4xf32>
    %cst_21 = arith.constant dense<0xFF800000> : vector<4xf32>
    %33 = vector.multi_reduction <maximumf>, %32, %cst_21 [0] : vector<64x4xf32> to vector<4xf32>
    %34 = vector.shape_cast %33 : vector<4xf32> to vector<1x4xf32>
    %35 = arith.maximumf %34, %27 : vector<1x4xf32>
    %36 = arith.subf %27, %35 : vector<1x4xf32>
    %37 = math.exp %36 : vector<1x4xf32>
    %38 = vector.broadcast %35 : vector<1x4xf32> to vector<64x4xf32>
    %39 = arith.subf %32, %38 : vector<64x4xf32>
    %40 = math.exp %39 : vector<64x4xf32>
    %cst_22 = arith.constant dense<0.000000e+00> : vector<4xf32>
    %41 = vector.multi_reduction <add>, %40, %cst_22 [0] : vector<64x4xf32> to vector<4xf32>
    %42 = vector.shape_cast %41 : vector<4xf32> to vector<1x4xf32>
    %43 = arith.addf %37, %42 : vector<1x4xf32>
    %44 = tpu.reciprocal %43 {approx = true} : vector<1x4xf32> -> vector<1x4xf32>
    %45 = arith.mulf %37, %44 : vector<1x4xf32>
    %46 = vector.broadcast %44 : vector<1x4xf32> to vector<64x4xf32>
    %47 = arith.mulf %40, %46 : vector<64x4xf32>
    %cst_23 = arith.constant dense<0.000000e+00> : vector<1x128xf32>
    %48 = tpu.matmul %45, %23, %cst_23 {dimension_numbers = #tpu.dot_dimension_numbers<[1], [0], [0], [1], [0, 0, 1, 1], [], []>} : vector<1x4xf32>, vector<4x128xf32>, vector<1x128xf32> -> vector<1x128xf32>
    %49 = arith.mulf %48, %19 : vector<1x128xf32>
    %cst_24 = arith.constant dense<0.000000e+00> : vector<64x128xf32>
    %50 = tpu.matmul %47, %23, %cst_24 {dimension_numbers = #tpu.dot_dimension_numbers<[1], [0], [0], [1], [0, 0, 1, 1], [], []>} : vector<64x4xf32>, vector<4x128xf32>, vector<64x128xf32> -> vector<64x128xf32>
    %51 = arith.mulf %50, %21 : vector<64x128xf32>
    %cst_25 = arith.constant dense<0.000000e+00> : vector<128xf32>
    %52 = vector.multi_reduction <add>, %51, %cst_25 [0] : vector<64x128xf32> to vector<128xf32>
    %53 = vector.shape_cast %52 : vector<128xf32> to vector<1x128xf32>
    %54 = arith.addf %49, %53 : vector<1x128xf32>
    %c0_26 = arith.constant 0 : index
    %c0_27 = arith.constant 0 : index
    %55 = vector.load %arg8[%c0_26, %c0_27] : memref<128x256xf32, #tpu.memory_space<vmem>>, vector<128x256xf32>
    %cst_28 = arith.constant dense<0.000000e+00> : vector<1x256xf32>
    %56 = tpu.matmul %54, %55, %cst_28 {dimension_numbers = #tpu.dot_dimension_numbers<[1], [0], [0], [1], [0, 0, 1, 1], [], []>} : vector<1x128xf32>, vector<128x256xf32>, vector<1x256xf32> -> vector<1x256xf32>
    %c0_29 = arith.constant 0 : index
    %c0_30 = arith.constant 0 : index
    %57 = vector.load %arg9[%c0_29, %c0_30] : memref<1x256xf32, #tpu.memory_space<vmem>>, vector<1x256xf32>
    %58 = arith.addf %56, %57 : vector<1x256xf32>
    %c0_31 = arith.constant 0 : index
    %c0_32 = arith.constant 0 : index
    %c0_33 = arith.constant 0 : index
    %59 = vector.load %arg10[%c0_31, %c0_32, %c0_33] : memref<1x1x256xf32, #tpu.memory_space<vmem>>, vector<1x1x256xf32>
    %60 = vector.shape_cast %59 : vector<1x1x256xf32> to vector<1x256xf32>
    %61 = vector.shape_cast %58 : vector<1x256xf32> to vector<1x1x256xf32>
    tpu.vector_store %arg10[%c0_31, %c0_32, %c0_33], %61 {strides = array<i32>} : memref<1x1x256xf32, #tpu.memory_space<vmem>>, vector<1x1x256xf32>,
    return
  }
  func.func @transform_0(%arg0: i32) -> (i32, i32, i32) {
    %c0_i32 = arith.constant 0 : i32
    %c0_i32_0 = arith.constant 0 : i32
    %c0_i32_1 = arith.constant 0 : i32
    return %arg0, %c0_i32, %c0_i32_0 : i32, i32, i32
  }
  func.func @transform_1(%arg0: i32) -> (i32, i32) {
    %c0_i32 = arith.constant 0 : i32
    %c0_i32_0 = arith.constant 0 : i32
    %c0_i32_1 = arith.constant 0 : i32
    return %c0_i32, %c0_i32_0 : i32, i32
  }
  func.func @transform_2(%arg0: i32) -> (i32, i32) {
    %c0_i32 = arith.constant 0 : i32
    %c0_i32_0 = arith.constant 0 : i32
    %c0_i32_1 = arith.constant 0 : i32
    return %c0_i32, %c0_i32_0 : i32, i32
  }
  func.func @transform_3(%arg0: i32) -> (i32, i32) {
    %c0_i32 = arith.constant 0 : i32
    %c0_i32_0 = arith.constant 0 : i32
    %c0_i32_1 = arith.constant 0 : i32
    return %c0_i32, %c0_i32_0 : i32, i32
  }
  func.func @transform_4(%arg0: i32) -> (i32, i32) {
    %c0_i32 = arith.constant 0 : i32
    %c0_i32_0 = arith.constant 0 : i32
    %c0_i32_1 = arith.constant 0 : i32
    return %c0_i32, %c0_i32_0 : i32, i32
  }
  func.func @transform_5(%arg0: i32) -> (i32, i32) {
    %c0_i32 = arith.constant 0 : i32
    %c0_i32_0 = arith.constant 0 : i32
    %c0_i32_1 = arith.constant 0 : i32
    return %c0_i32, %c0_i32_0 : i32, i32
  }
  func.func @transform_6(%arg0: i32) -> (i32, i32) {
    %c0_i32 = arith.constant 0 : i32
    %c0_i32_0 = arith.constant 0 : i32
    %c0_i32_1 = arith.constant 0 : i32
    return %c0_i32, %c0_i32_0 : i32, i32
  }
  func.func @transform_7(%arg0: i32) -> (i32, i32) {
    %c0_i32 = arith.constant 0 : i32
    %c0_i32_0 = arith.constant 0 : i32
    %c0_i32_1 = arith.constant 0 : i32
    return %c0_i32, %c0_i32_0 : i32, i32
  }
  func.func @transform_8(%arg0: i32) -> (i32, i32) {
    %c0_i32 = arith.constant 0 : i32
    %c0_i32_0 = arith.constant 0 : i32
    %c0_i32_1 = arith.constant 0 : i32
    return %c0_i32, %c0_i32_0 : i32, i32
  }
  func.func @transform_9(%arg0: i32) -> (i32, i32, i32) {
    %c0_i32 = arith.constant 0 : i32
    %c0_i32_0 = arith.constant 0 : i32
    %c0_i32_1 = arith.constant 0 : i32
    return %arg0, %c0_i32, %c0_i32_0 : i32, i32, i32
  }
}

</mosaic_0001>

<llo_original>
// kernel: tpu_custom_call.1
$region0: #{tpu_custom_call.1}
  #allocation0 [shape = 'u32[]', space=smem, size = 0x4, offset = 0x4, fixed_abs, tag = 'smem constant byte address 0x4 - core index']
  #allocation1 [shape = 'u32[144,128]{1,0:T(1,128)}', space=vmem, size = 0x12000, scoped, tag = 'internal scratch']
  %s0 = inlined_call_operand.vmem [shape: f32[2,64,128], index: 0, kind: input, shape index: {}]
  %s1 = inlined_call_operand.hbm [shape: f32[1,128], index: 1, kind: input, shape index: {}]
  %s2 = inlined_call_operand.hbm [shape: f32[64,128], index: 2, kind: input, shape index: {}]
  %s3 = inlined_call_operand.hbm [shape: f32[128,384], index: 3, kind: input, shape index: {}]
  %s4 = inlined_call_operand.vmem [shape: f32[1,384], index: 4, kind: input, shape index: {}]
  %s5 = inlined_call_operand.vmem [shape: f32[128,4], index: 5, kind: input, shape index: {}]
  %s6 = inlined_call_operand.vmem [shape: f32[4,128], index: 6, kind: input, shape index: {}]
  %s7 = inlined_call_operand.hbm [shape: f32[128,256], index: 7, kind: input, shape index: {}]
  %s8 = inlined_call_operand.vmem [shape: f32[1,256], index: 8, kind: input, shape index: {}]
  %s9 = inlined_call_operand.hbm [shape: f32[2,1,256], index: 9, kind: output, shape index: {}]
  %s10 = sld [smem:[#allocation0]]
  $region85: #{tpu_custom_call.1} parent=0
    _
  %s12 = ssub.s32 1, %s10
  %s13 = scalar_select 0, %s12, %s10
  $region1: #{tpu_custom_call.1} parent=0
    #allocation2 [shape = 'u8[512]{0}', space=vmem, size = 0x400, scoped, tag = 'input window, operand 1, single buffered']
    #allocation3 [shape = 's32[2]{0}', space=sflag, size = 0x8, scoped, tag = 'scoped memory for tpu_custom_call.1']
    #allocation4 [shape = 's32[2]{0}', space=sflag, size = 0x8, scoped, tag = 'scoped memory for tpu_custom_call.1']
    #allocation5 [shape = 'u8[32768]{0}', space=vmem, size = 0x8000, scoped, tag = 'input window, operand 2, single buffered']
    #allocation6 [shape = 's32[1]{0}', space=sflag, size = 0x4, scoped, tag = 'scoped memory for tpu_custom_call.1']
    #allocation7 [shape = 'u8[196608]{0}', space=vmem, size = 0x30000, scoped, tag = 'input window, operand 3, single buffered']
    #allocation8 [shape = 'u8[131072]{0}', space=vmem, size = 0x20000, scoped, tag = 'input window, operand 7, single buffered']
    #allocation9 [shape = 's32[1]{0}', space=sflag, size = 0x4, scoped, tag = 'scoped memory for tpu_custom_call.1']
    #allocation10 [shape = 'u8[2048]{0}', space=vmem, size = 0x800, scoped, tag = 'output window, operand 0']
    %14 = vsyncpa [#allocation3], 0
    %15 = vsyncpa [#allocation6], 0
    %16 = vsyncpa [#allocation9], 0
    %17 = vsyncpa [#allocation4], 0
    %s18 = scalar_lea.sflag [#allocation4], 1
    %19 = vsyncpa %s18, 0
    loop: start=0, step=1, limit=4
    $region2: #{tpu_custom_call.1} parent=1 // loop_pre_header
      _
    $region3: #{tpu_custom_call.1} parent=1 // loop_header
      %s21 = sphi 0, %s25
      %p22 = scmp.ge.s32.totalorder %s21, 4
      %s31 = sphi 0, %s33
      %s34 = sphi 0, %s31
      %s35 = sphi 0, %s34
      %s51 = sphi 0, %s35
      %s55 = sphi 0, %s55
      %s57 = sphi 0, %s55
      %s58 = sphi 0, %s57
      %s72 = sphi 0, %s58
      %s76 = sphi 0, %s76
      %s78 = sphi 0, %s76
      %s79 = sphi 0, %s78
      %s93 = sphi 0, %s79
      %s97 = sphi 0, %s97
      %s99 = sphi 0, %s97
      %s100 = sphi 0, %s99
      %s114 = sphi 0, %s100
      %s118 = sphi 0, %s118
      %s120 = sphi 0, %s118
      %s121 = sphi 0, %s120
      %s135 = sphi 0, %s121
      %s139 = sphi 0, %s139
      %s141 = sphi 0, %s139
      %s142 = sphi 0, %s141
      %s156 = sphi 0, %s142
      %s160 = sphi 0, %s160
      %s162 = sphi 0, %s160
      %s163 = sphi 0, %s162
      %s177 = sphi 0, %s163
      %s181 = sphi 0, %s181
      %s183 = sphi 0, %s181
      %s184 = sphi 0, %s183
      %s198 = sphi 0, %s184
      %s202 = sphi 0, %s202
      %s204 = sphi 0, %s202
      %s205 = sphi 0, %s204
      %s219 = sphi 0, %s205
      %s225 = sphi 0, %s227
      %s228 = sphi 0, %s225
      %s229 = sphi 0, %s228
      %s245 = sphi 0, %s229
    $region4: #{tpu_custom_call.1} parent=1 // loop_header_branch
      %24 = sbr.rel (%p22) target = $region8
    $region5: #{tpu_custom_call.1} parent=1 // loop_body
      %s26 = ssub.s32 %s21, 1
      %s27 = ssub.s32 %s21, 2
      %s28 = sadd.s32 %s21, 1
      %s29 = ssub.s32 %s21, %s28
      %p30 = scmp.eq.s32.totalorder %s29, 0
      %s32 = sadd.s32 %s31, 1
      %s33 = scalar_select %p30, %s31, %s32
      %p36 = pneg %p30
      %p37 = scmp.eq.s32.totalorder %s21, 1
      %p38 = por %p36, %p37
      %p39 = scmp.ne.s32.totalorder %s31, %s34
      %p40 = scmp.eq.s32.totalorder %s21, 0
      %p41 = por %p39, %p40
      %p42 = scmp.ne.s32.totalorder %s31, %s34
      %p43 = scmp.eq.s32.totalorder %s26, 1
      %p44 = por %p42, %p43
      %p45 = scmp.ne.s32.totalorder %s34, %s35
      %p46 = scmp.eq.s32.totalorder %s26, 0
      %p47 = por %p45, %p46
      %p48 = scmp.ne.s32.totalorder %s34, %s35
      %p49 = scmp.eq.s32.totalorder %s27, 1
      %p50 = por %p48, %p49
      %p52 = scmp.ne.s32.totalorder %s35, %s51
      %p53 = scmp.eq.s32.totalorder %s27, 0
      %p54 = por %p52, %p53
      %s56 = sadd.s32 %s55, 1
      %p59 = scmp.eq.s32.totalorder %s21, 1
      %p60 = scmp.ne.s32.totalorder %s55, %s57
      %p61 = scmp.eq.s32.totalorder %s21, 0
      %p62 = por %p60, %p61
      %p63 = scmp.ne.s32.totalorder %s55, %s57
      %p64 = scmp.eq.s32.totalorder %s26, 1
      %p65 = por %p63, %p64
      %p66 = scmp.ne.s32.totalorder %s57, %s58
      %p67 = scmp.eq.s32.totalorder %s26, 0
      %p68 = por %p66, %p67
      %p69 = scmp.ne.s32.totalorder %s57, %s58
      %p70 = scmp.eq.s32.totalorder %s27, 1
      %p71 = por %p69, %p70
      %p73 = scmp.ne.s32.totalorder %s58, %s72
      %p74 = scmp.eq.s32.totalorder %s27, 0
      %p75 = por %p73, %p74
      %s77 = sadd.s32 %s76, 1
      %p80 = scmp.eq.s32.totalorder %s21, 1
      %p81 = scmp.ne.s32.totalorder %s76, %s78
      %p82 = scmp.eq.s32.totalorder %s21, 0
      %p83 = por %p81, %p82
      %p84 = scmp.ne.s32.totalorder %s76, %s78
      %p85 = scmp.eq.s32.totalorder %s26, 1
      %p86 = por %p84, %p85
      %p87 = scmp.ne.s32.totalorder %s78, %s79
      %p88 = scmp.eq.s32.totalorder %s26, 0
      %p89 = por %p87, %p88
      %p90 = scmp.ne.s32.totalorder %s78, %s79
      %p91 = scmp.eq.s32.totalorder %s27, 1
      %p92 = por %p90, %p91
      %p94 = scmp.ne.s32.totalorder %s79, %s93
      %p95 = scmp.eq.s32.totalorder %s27, 0
      %p96 = por %p94, %p95
      %s98 = sadd.s32 %s97, 1
      %p101 = scmp.eq.s32.totalorder %s21, 1
      %p102 = scmp.ne.s32.totalorder %s97, %s99
      %p103 = scmp.eq.s32.totalorder %s21, 0
      %p104 = por %p102, %p103
      %p105 = scmp.ne.s32.totalorder %s97, %s99
      %p106 = scmp.eq.s32.totalorder %s26, 1
      %p107 = por %p105, %p106
      %p108 = scmp.ne.s32.totalorder %s99, %s100
      %p109 = scmp.eq.s32.totalorder %s26, 0
      %p110 = por %p108, %p109
      %p111 = scmp.ne.s32.totalorder %s99, %s100
      %p112 = scmp.eq.s32.totalorder %s27, 1
      %p113 = por %p111, %p112
      %p115 = scmp.ne.s32.totalorder %s100, %s114
      %p116 = scmp.eq.s32.totalorder %s27, 0
      %p117 = por %p115, %p116
      %s119 = sadd.s32 %s118, 1
      %p122 = scmp.eq.s32.totalorder %s21, 1
      %p123 = scmp.ne.s32.totalorder %s118, %s120
      %p124 = scmp.eq.s32.totalorder %s21, 0
      %p125 = por %p123, %p124
      %p126 = scmp.ne.s32.totalorder %s118, %s120
      %p127 = scmp.eq.s32.totalorder %s26, 1
      %p128 = por %p126, %p127
      %p129 = scmp.ne.s32.totalorder %s120, %s121
      %p130 = scmp.eq.s32.totalorder %s26, 0
      %p131 = por %p129, %p130
      %p132 = scmp.ne.s32.totalorder %s120, %s121
      %p133 = scmp.eq.s32.totalorder %s27, 1
      %p134 = por %p132, %p133
      %p136 = scmp.ne.s32.totalorder %s121, %s135
      %p137 = scmp.eq.s32.totalorder %s27, 0
      %p138 = por %p136, %p137
      %s140 = sadd.s32 %s139, 1
      %p143 = scmp.eq.s32.totalorder %s21, 1
      %p144 = scmp.ne.s32.totalorder %s139, %s141
      %p145 = scmp.eq.s32.totalorder %s21, 0
      %p146 = por %p144, %p145
      %p147 = scmp.ne.s32.totalorder %s139, %s141
      %p148 = scmp.eq.s32.totalorder %s26, 1
      %p149 = por %p147, %p148
      %p150 = scmp.ne.s32.totalorder %s141, %s142
      %p151 = scmp.eq.s32.totalorder %s26, 0
      %p152 = por %p150, %p151
      %p153 = scmp.ne.s32.totalorder %s141, %s142
      %p154 = scmp.eq.s32.totalorder %s27, 1
      %p155 = por %p153, %p154
      %p157 = scmp.ne.s32.totalorder %s142, %s156
      %p158 = scmp.eq.s32.totalorder %s27, 0
      %p159 = por %p157, %p158
      %s161 = sadd.s32 %s160, 1
      %p164 = scmp.eq.s32.totalorder %s21, 1
      %p165 = scmp.ne.s32.totalorder %s160, %s162
      %p166 = scmp.eq.s32.totalorder %s21, 0
      %p167 = por %p165, %p166
      %p168 = scmp.ne.s32.totalorder %s160, %s162
      %p169 = scmp.eq.s32.totalorder %s26, 1
      %p170 = por %p168, %p169
      %p171 = scmp.ne.s32.totalorder %s162, %s163
      %p172 = scmp.eq.s32.totalorder %s26, 0
      %p173 = por %p171, %p172
      %p174 = scmp.ne.s32.totalorder %s162, %s163
      %p175 = scmp.eq.s32.totalorder %s27, 1
      %p176 = por %p174, %p175
      %p178 = scmp.ne.s32.totalorder %s163, %s177
      %p179 = scmp.eq.s32.totalorder %s27, 0
      %p180 = por %p178, %p179
      %s182 = sadd.s32 %s181, 1
      %p185 = scmp.eq.s32.totalorder %s21, 1
      %p186 = scmp.ne.s32.totalorder %s181, %s183
      %p187 = scmp.eq.s32.totalorder %s21, 0
      %p188 = por %p186, %p187
      %p189 = scmp.ne.s32.totalorder %s181, %s183
      %p190 = scmp.eq.s32.totalorder %s26, 1
      %p191 = por %p189, %p190
      %p192 = scmp.ne.s32.totalorder %s183, %s184
      %p193 = scmp.eq.s32.totalorder %s26, 0
      %p194 = por %p192, %p193
      %p195 = scmp.ne.s32.totalorder %s183, %s184
      %p196 = scmp.eq.s32.totalorder %s27, 1
      %p197 = por %p195, %p196
      %p199 = scmp.ne.s32.totalorder %s184, %s198
      %p200 = scmp.eq.s32.totalorder %s27, 0
      %p201 = por %p199, %p200
      %s203 = sadd.s32 %s202, 1
      %p206 = scmp.eq.s32.totalorder %s21, 1
      %p207 = scmp.ne.s32.totalorder %s202, %s204
      %p208 = scmp.eq.s32.totalorder %s21, 0
      %p209 = por %p207, %p208
      %p210 = scmp.ne.s32.totalorder %s202, %s204
      %p211 = scmp.eq.s32.totalorder %s26, 1
      %p212 = por %p210, %p211
      %p213 = scmp.ne.s32.totalorder %s204, %s205
      %p214 = scmp.eq.s32.totalorder %s26, 0
      %p215 = por %p213, %p214
      %p216 = scmp.ne.s32.totalorder %s204, %s205
      %p217 = scmp.eq.s32.totalorder %s27, 1
      %p218 = por %p216, %p217
      %p220 = scmp.ne.s32.totalorder %s205, %s219
      %p221 = scmp.eq.s32.totalorder %s27, 0
      %p222 = por %p220, %p221
      %s223 = ssub.s32 %s21, %s28
      %p224 = scmp.eq.s32.totalorder %s223, 0
      %s226 = sadd.s32 %s225, 1
      %s227 = scalar_select %p224, %s225, %s226
      %p230 = pneg %p224
      %p231 = scmp.eq.s32.totalorder %s21, 1
      %p232 = por %p230, %p231
      %p233 = scmp.ne.s32.totalorder %s225, %s228
      %p234 = scmp.eq.s32.totalorder %s21, 0
      %p235 = por %p233, %p234
      %p236 = scmp.ne.s32.totalorder %s225, %s228
      %p237 = scmp.eq.s32.totalorder %s26, 1
      %p238 = por %p236, %p237
      %p239 = scmp.ne.s32.totalorder %s228, %s229
      %p240 = scmp.eq.s32.totalorder %s26, 0
      %p241 = por %p239, %p240
      %p242 = scmp.ne.s32.totalorder %s228, %s229
      %p243 = scmp.eq.s32.totalorder %s27, 1
      %p244 = por %p242, %p243
      %p246 = scmp.ne.s32.totalorder %s229, %s245
      %p247 = scmp.eq.s32.totalorder %s27, 0
      %p248 = por %p246, %p247
      %p249 = scmp.le.s32.totalorder 1, %s21
      %p250 = scmp.lt.s32.totalorder %s21, 3
      %p251 = pnand %p249, %p250
      %p252 = pneg %p251
      // Predicated region
      $region9: #{tpu_custom_call.1} parent=5 // pred_check
        _
      $region10: #{tpu_custom_call.1} parent=5 // pred_check_branch
        %254 = sbr.rel (%p251) target = $region12
      $region11: #{tpu_custom_call.1} parent=5 // pred_region
        %s255 = ssub.s32 %s21, 1
        // Predicated region
        $region13: #{tpu_custom_call.1} parent=11 // pred_check
          %p256 = pneg %p68
        $region14: #{tpu_custom_call.1} parent=11 // pred_check_branch
          %258 = sbr.rel (%p256) target = $region16
        $region15: #{tpu_custom_call.1} parent=11 // pred_region
          %s260 = ssub.s32 16, 16
          %261 = vsyncadd [#allocation3], %s260
          %s263 = sshll.u32 [#allocation2], 4
          %s264 = int_to_ptr.vmem [resolvable:$true] %s263
          %266 = dma.hbm_to_vmem [thread:$0]  %s1, 16, %s264, [#allocation3]
        $region16: #{tpu_custom_call.1} parent=11 // pred_fallthru
          _
        // Predicated region
        $region17: #{tpu_custom_call.1} parent=11 // pred_check
          %p267 = pneg %p89
        $region18: #{tpu_custom_call.1} parent=11 // pred_check_branch
          %269 = sbr.rel (%p267) target = $region20
        $region19: #{tpu_custom_call.1} parent=11 // pred_region
          %s271 = ssub.s32 1024, 1024
          %272 = vsyncadd [#allocation6], %s271
          %s273 = sshll.u32 [#allocation5], 4
          %s274 = int_to_ptr.vmem [resolvable:$true] %s273
          %279 = dma.hbm_to_vmem [thread:$0]  %s2, 1024, %s274, [#allocation6], 128, 128, 8
        $region20: #{tpu_custom_call.1} parent=11 // pred_fallthru
          _
        // Predicated region
        $region21: #{tpu_custom_call.1} parent=11 // pred_check
          %p280 = pneg %p110
        $region22: #{tpu_custom_call.1} parent=11 // pred_check_branch
          %282 = sbr.rel (%p280) target = $region24
        $region23: #{tpu_custom_call.1} parent=11 // pred_region
          %s284 = ssub.s32 6144, 6144
          %285 = vsyncadd [#allocation6], %s284
          %s286 = sshll.u32 [#allocation7], 4
          %s287 = int_to_ptr.vmem [resolvable:$true] %s286
          %292 = dma.hbm_to_vmem [thread:$0]  %s3, 6144, %s287, [#allocation6], 384, 384, 24
        $region24: #{tpu_custom_call.1} parent=11 // pred_fallthru
          _
        // Predicated region
        $region25: #{tpu_custom_call.1} parent=11 // pred_check
          %p293 = pneg %p131
        $region26: #{tpu_custom_call.1} parent=11 // pred_check_branch
          %295 = sbr.rel (%p293) target = $region28
        $region27: #{tpu_custom_call.1} parent=11 // pred_region
          _
        $region28: #{tpu_custom_call.1} parent=11 // pred_fallthru
          _
        // Predicated region
        $region29: #{tpu_custom_call.1} parent=11 // pred_check
          %p296 = pneg %p152
        $region30: #{tpu_custom_call.1} parent=11 // pred_check_branch
          %298 = sbr.rel (%p296) target = $region32
        $region31: #{tpu_custom_call.1} parent=11 // pred_region
          _
        $region32: #{tpu_custom_call.1} parent=11 // pred_fallthru
          _
        // Predicated region
        $region33: #{tpu_custom_call.1} parent=11 // pred_check
          %p299 = pneg %p173
        $region34: #{tpu_custom_call.1} parent=11 // pred_check_branch
          %301 = sbr.rel (%p299) target = $region36
        $region35: #{tpu_custom_call.1} parent=11 // pred_region
          _
        $region36: #{tpu_custom_call.1} parent=11 // pred_fallthru
          _
        // Predicated region
        $region37: #{tpu_custom_call.1} parent=11 // pred_check
          %p302 = pneg %p194
        $region38: #{tpu_custom_call.1} parent=11 // pred_check_branch
          %304 = sbr.rel (%p302) target = $region40
        $region39: #{tpu_custom_call.1} parent=11 // pred_region
          %s306 = ssub.s32 4096, 4096
          %307 = vsyncadd [#allocation9], %s306
          %s308 = sshll.u32 [#allocation8], 4
          %s309 = int_to_ptr.vmem [resolvable:$true] %s308
          %314 = dma.hbm_to_vmem [thread:$0]  %s7, 4096, %s309, [#allocation9], 256, 256, 16
        $region40: #{tpu_custom_call.1} parent=11 // pred_fallthru
          _
        // Predicated region
        $region41: #{tpu_custom_call.1} parent=11 // pred_check
          %p315 = pneg %p215
        $region42: #{tpu_custom_call.1} parent=11 // pred_check_branch
          %317 = sbr.rel (%p315) target = $region44
        $region43: #{tpu_custom_call.1} parent=11 // pred_region
          _
        $region44: #{tpu_custom_call.1} parent=11 // pred_fallthru
          _
      $region12: #{tpu_custom_call.1} parent=5 // pred_fallthru
        _
      %p318 = scmp.lt.s32.totalorder %s21, 2
      // Predicated region
      $region45: #{tpu_custom_call.1} parent=5 // pred_check
        %p319 = pneg %p318
      $region46: #{tpu_custom_call.1} parent=5 // pred_check_branch
        %321 = sbr.rel (%p319) target = $region48
      $region47: #{tpu_custom_call.1} parent=5 // pred_region
        // Predicated region
        $region49: #{tpu_custom_call.1} parent=47 // pred_check
          %p322 = pneg %p41
        $region50: #{tpu_custom_call.1} parent=47 // pred_check_branch
          %324 = sbr.rel (%p322) target = $region52
        $region51: #{tpu_custom_call.1} parent=47 // pred_region
          %p325 = scmp.lt.s32.totalorder %s21, 1
          %s326 = scalar_select %p325, %s21, 1
          %s327 = smul.addr %s326, 8
          %s328 = smul.addr %s327, 8
          %s329 = scalar_lea.vmem %s0, %s328
        $region52: #{tpu_custom_call.1} parent=47 // pred_fallthru
          _
      $region48: #{tpu_custom_call.1} parent=5 // pred_fallthru
        _
      %p330 = scmp.le.s32.totalorder 1, %s21
      %p331 = scmp.lt.s32.totalorder %s21, 3
      %p332 = pnand %p330, %p331
      %p333 = pneg %p332
      // Predicated region
      $region53: #{tpu_custom_call.1} parent=5 // pred_check
        _
      $region54: #{tpu_custom_call.1} parent=5 // pred_check_branch
        %335 = sbr.rel (%p332) target = $region56
      $region55: #{tpu_custom_call.1} parent=5 // pred_region
        %s336 = ssub.s32 %s21, 1
        // Predicated region
        $region57: #{tpu_custom_call.1} parent=55 // pred_check
          %p337 = pneg %p68
        $region58: #{tpu_custom_call.1} parent=55 // pred_check_branch
          %339 = sbr.rel (%p337) target = $region60
        $region59: #{tpu_custom_call.1} parent=55 // pred_region
          %340 = dma.done [#allocation3], 16
        $region60: #{tpu_custom_call.1} parent=55 // pred_fallthru
          _
        // Predicated region
        $region61: #{tpu_custom_call.1} parent=55 // pred_check
          %p341 = pneg %p89
        $region62: #{tpu_custom_call.1} parent=55 // pred_check_branch
          %343 = sbr.rel (%p341) target = $region64
        $region63: #{tpu_custom_call.1} parent=55 // pred_region
          %344 = dma.done [#allocation6], 1024
        $region64: #{tpu_custom_call.1} parent=55 // pred_fallthru
          _
        // Predicated region
        $region65: #{tpu_custom_call.1} parent=55 // pred_check
          %p345 = pneg %p110
        $region66: #{tpu_custom_call.1} parent=55 // pred_check_branch
          %347 = sbr.rel (%p345) target = $region68
        $region67: #{tpu_custom_call.1} parent=55 // pred_region
          %348 = dma.done [#allocation6], 6144
        $region68: #{tpu_custom_call.1} parent=55 // pred_fallthru
          _
        // Predicated region
        $region69: #{tpu_custom_call.1} parent=55 // pred_check
          %p349 = pneg %p194
        $region70: #{tpu_custom_call.1} parent=55 // pred_check_branch
          %351 = sbr.rel (%p349) target = $region72
        $region71: #{tpu_custom_call.1} parent=55 // pred_region
          %352 = dma.done [#allocation9], 4096
        $region72: #{tpu_custom_call.1} parent=55 // pred_fallthru
          _
        %p353 = scmp.lt.s32.totalorder %s26, 1
        %s354 = scalar_select %p353, %s26, 1
        %s355 = smul.addr %s354, 8
        %s356 = smul.addr %s355, 8
        %s357 = scalar_lea.vmem %s0, %s356
        %p358 = pneg %p47
        %p359 = pneg %p44
        %p360 = pneg %p68
        %p361 = pneg %p65
        %p362 = pneg %p89
        %p363 = pneg %p86
        %p364 = pneg %p110
        %p365 = pneg %p107
        %p366 = pneg %p131
        %p367 = pneg %p128
        %p368 = pneg %p152
        %p369 = pneg %p149
        %p370 = pneg %p173
        %p371 = pneg %p170
        %p372 = pneg %p194
        %p373 = pneg %p191
        %p374 = pneg %p215
        %p375 = pneg %p212
        %p376 = pneg %p241
        %p377 = pneg %p238
        %s378 = sand.u32 %s228, 1
        %s379 = scalar_lea.sflag [#allocation4], %s378
        %s380 = sand.u32 %s228, 1
        %s381 = smul.addr %s380, 2
        %s382 = scalar_lea.vmem [#allocation10], %s381
        %p383 = scmp.lt.s32.totalorder %s26, 1
        %s384 = scalar_select %p383, %s26, 1
        %s385 = smul.addr %s384, 8
        %s386 = smul.addr %s385, 8
        %s387 = scalar_lea.vmem %s0, %s386
        %v388 = vld [vmem:[%s387] sm:$0xff]
        %v389 = vld [vmem:[%s387 + $0x8] sm:$0xff]
        %v390 = vld [vmem:[%s387 + $0x10] sm:$0xff]
        %v391 = vld [vmem:[%s387 + $0x18] sm:$0xff]
        %v392 = vld [vmem:[%s387 + $0x20] sm:$0xff]
        %v393 = vld [vmem:[%s387 + $0x28] sm:$0xff]
        %v394 = vld [vmem:[%s387 + $0x30] sm:$0xff]
        %v395 = vld [vmem:[%s387 + $0x38] sm:$0xff]
        %v396 = vadd.f32 %v388, %v389
        %v397 = vadd.f32 %v396, %v390
        %v398 = vadd.f32 %v397, %v391
        %v399 = vadd.f32 %v398, %v392
        %v400 = vadd.f32 %v399, %v393
        %v401 = vadd.f32 %v400, %v394
        %v402 = vadd.f32 %v401, %v395
        %v403 = vrot.slane %v402, 4
        %v404 = vadd.f32 %v402, %v403
        %v405 = vrot.slane %v404, 2
        %v406 = vadd.f32 %v404, %v405
        %v407 = vrot.slane %v406, 1
        %v408 = vadd.f32 %v406, %v407
        %v409 = vrcp.pop 64.0
        %v410 = vmul.f32 %v408, %v409
        %v411 = vld [vmem:[#allocation2] sm:$0x1]
        %v412 = vadd.f32 %v410, %v411
        %v413 = vld [vmem:[#allocation5] sm:$0xff]
        %v414 = vld [vmem:[#allocation5 + $0x8] sm:$0xff]
        %v415 = vld [vmem:[#allocation5 + $0x10] sm:$0xff]
        %v416 = vld [vmem:[#allocation5 + $0x18] sm:$0xff]
        %v417 = vld [vmem:[#allocation5 + $0x20] sm:$0xff]
        %v418 = vld [vmem:[#allocation5 + $0x28] sm:$0xff]
        %v419 = vld [vmem:[#allocation5 + $0x30] sm:$0xff]
        %v420 = vld [vmem:[#allocation5 + $0x38] sm:$0xff]
        %v421 = vadd.f32 %v388, %v413
        %v422 = vadd.f32 %v389, %v414
        %v423 = vadd.f32 %v390, %v415
        %v424 = vadd.f32 %v391, %v416
        %v425 = vadd.f32 %v392, %v417
        %v426 = vadd.f32 %v393, %v418
        %v427 = vadd.f32 %v394, %v419
        %v428 = vadd.f32 %v395, %v420
        %v429 = vld [vmem:[#allocation7] sm:$0xff]
        %v430 = vld [vmem:[#allocation7 + $0x8] sm:$0xff]
        %v431 = vld [vmem:[#allocation7 + $0x10] sm:$0xff]
        %v432 = vld [vmem:[#allocation7 + $0x18] sm:$0xff]
        %v433 = vld [vmem:[#allocation7 + $0x20] sm:$0xff]
        %v434 = vld [vmem:[#allocation7 + $0x28] sm:$0xff]
        %v435 = vld [vmem:[#allocation7 + $0x30] sm:$0xff]
        %v436 = vld [vmem:[#allocation7 + $0x38] sm:$0xff]
        %v437 = vld [vmem:[#allocation7 + $0x40] sm:$0xff]
        %v438 = vld [vmem:[#allocation7 + $0x48] sm:$0xff]
        %v439 = vld [vmem:[#allocation7 + $0x50] sm:$0xff]
        %v440 = vld [vmem:[#allocation7 + $0x58] sm:$0xff]
        %v441 = vld [vmem:[#allocation7 + $0x60] sm:$0xff]
        %v442 = vld [vmem:[#allocation7 + $0x68] sm:$0xff]
        %v443 = vld [vmem:[#allocation7 + $0x70] sm:$0xff]
        %v444 = vld [vmem:[#allocation7 + $0x78] sm:$0xff]
        %v445 = vld [vmem:[#allocation7 + $0x80] sm:$0xff]
        %v446 = vld [vmem:[#allocation7 + $0x88] sm:$0xff]
        %v447 = vld [vmem:[#allocation7 + $0x90] sm:$0xff]
        %v448 = vld [vmem:[#allocation7 + $0x98] sm:$0xff]
        %v449 = vld [vmem:[#allocation7 + $0xa0] sm:$0xff]
        %v450 = vld [vmem:[#allocation7 + $0xa8] sm:$0xff]
        %v451 = vld [vmem:[#allocation7 + $0xb0] sm:$0xff]
        %v452 = vld [vmem:[#allocation7 + $0xb8] sm:$0xff]
        %v453 = vld [vmem:[#allocation7 + $0xc0] sm:$0xff]
        %v454 = vld [vmem:[#allocation7 + $0xc8] sm:$0xff]
        %v455 = vld [vmem:[#allocation7 + $0xd0] sm:$0xff]
        %v456 = vld [vmem:[#allocation7 + $0xd8] sm:$0xff]
        %v457 = vld [vmem:[#allocation7 + $0xe0] sm:$0xff]
        %v458 = vld [vmem:[#allocation7 + $0xe8] sm:$0xff]
        %v459 = vld [vmem:[#allocation7 + $0xf0] sm:$0xff]
        %v460 = vld [vmem:[#allocation7 + $0xf8] sm:$0xff]
        %v461 = vld [vmem:[#allocation7 + $0x100] sm:$0xff]
        %v462 = vld [vmem:[#allocation7 + $0x108] sm:$0xff]
        %v463 = vld [vmem:[#allocation7 + $0x110] sm:$0xff]
        %v464 = vld [vmem:[#allocation7 + $0x118] sm:$0xff]
        %v465 = vld [vmem:[#allocation7 + $0x120] sm:$0xff]
        %v466 = vld [vmem:[#allocation7 + $0x128] sm:$0xff]
        %v467 = vld [vmem:[#allocation7 + $0x130] sm:$0xff]
        %v468 = vld [vmem:[#allocation7 + $0x138] sm:$0xff]
        %v469 = vld [vmem:[#allocation7 + $0x140] sm:$0xff]
        %v470 = vld [vmem:[#allocation7 + $0x148] sm:$0xff]
        %v471 = vld [vmem:[#allocation7 + $0x150] sm:$0xff]
        %v472 = vld [vmem:[#allocation7 + $0x158] sm:$0xff]
        %v473 = vld [vmem:[#allocation7 + $0x160] sm:$0xff]
        %v474 = vld [vmem:[#allocation7 + $0x168] sm:$0xff]
        %v475 = vld [vmem:[#allocation7 + $0x170] sm:$0xff]
        %v476 = vld [vmem:[#allocation7 + $0x178] sm:$0xff]
        %v477 = vld [vmem:[%s4] sm:$0x7]
        %v479 = vlaneseq
        %v480 = vshrl.u32 %v479, 7
        %v481 = vsub.s32 0, %v480
        %v482 = vrot.slane %v477, %v481
        %v483 = vlaneseq
        %v484 = vshrl.u32 %v483, 7
        %v485 = vsub.s32 1, %v484
        %v486 = vrot.slane %v477, %v485
        %v487 = vlaneseq
        %v488 = vshrl.u32 %v487, 7
        %v489 = vsub.s32 2, %v488
        %v490 = vrot.slane %v477, %v489
        %494 = vmatprep.subr.mxu0 %v430
        %495 = vmatpush1.msra.mxu0 %v429
        %496 = vmatprep.subr.mxu0 %v433
        %497 = vmatpush1.msra.mxu0 %v432
        %498 = vmatprep.subr.mxu0 %v436
        %499 = vmatpush1.msra.mxu0 %v435
        %500 = vmatprep.subr.mxu0 %v439
        %501 = vmatpush1.msra.mxu0 %v438
        %502 = vmatprep.subr.mxu0 %v442
        %503 = vmatpush1.msra.mxu0 %v441
        %504 = vmatprep.subr.mxu0 %v445
        %505 = vmatpush1.msra.mxu0 %v444
        %506 = vmatprep.subr.mxu0 %v448
        %507 = vmatpush1.msra.mxu0 %v447
        %508 = vmatprep.subr.mxu0 %v451
        %509 = vmatpush1.msra.mxu0 %v450
        %510 = vmatprep.subr.mxu0 %v454
        %511 = vmatpush1.msra.mxu0 %v453
        %512 = vmatprep.subr.mxu0 %v457
        %513 = vmatpush1.msra.mxu0 %v456
        %514 = vmatprep.subr.mxu0 %v460
        %515 = vmatpush1.msra.mxu0 %v459
        %516 = vmatprep.subr.mxu0 %v463
        %517 = vmatpush1.msra.mxu0 %v462
        %518 = vmatprep.subr.mxu0 %v466
        %519 = vmatpush1.msra.mxu0 %v465
        %520 = vmatprep.subr.mxu0 %v469
        %521 = vmatpush1.msra.mxu0 %v468
        %522 = vmatprep.subr.mxu0 %v472
        %523 = vmatpush1.msra.mxu0 %v471
        %524 = vmatprep.subr.mxu0 %v475
        %525 = vmatpush1.msra.mxu0 %v474
        %526 = vmatprep.subr.mxu0 0.0
        %527 = vmatpush1.msra.mxu0 0.0
        %528 = vmatprep.subr.mxu0 0.0
        %529 = vmatpush1.msra.mxu0 0.0
        %530 = vmatprep.subr.mxu0 0.0
        %531 = vmatpush1.msra.mxu0 0.0
        %532 = vmatprep.subr.mxu0 0.0
        %533 = vmatpush1.msra.mxu0 0.0
        %534 = vmatprep.subr.mxu0 0.0
        %535 = vmatpush1.msra.mxu0 0.0
        %536 = vmatprep.subr.mxu0 0.0
        %537 = vmatpush1.msra.mxu0 0.0
        %538 = vmatprep.subr.mxu0 0.0
        %539 = vmatpush1.msra.mxu0 0.0
        %540 = vmatprep.subr.mxu0 0.0
        %541 = vmatpush1.msra.mxu0 0.0
        %542 = vmatprep.subr.mxu0 0.0
        %543 = vmatpush1.msra.mxu0 0.0
        %544 = vmatprep.subr.mxu0 0.0
        %545 = vmatpush1.msra.mxu0 0.0
        %546 = vmatprep.subr.mxu0 0.0
        %547 = vmatpush1.msra.mxu0 0.0
        %548 = vmatprep.subr.mxu0 0.0
        %549 = vmatpush1.msra.mxu0 0.0
        %550 = vmatprep.subr.mxu0 0.0
        %551 = vmatpush1.msra.mxu0 0.0
        %552 = vmatprep.subr.mxu0 0.0
        %553 = vmatpush1.msra.mxu0 0.0
        %554 = vmatprep.subr.mxu0 0.0
        %555 = vmatpush1.msra.mxu0 0.0
        %556 = vmatprep.subr.mxu0 0.0
        %557 = vmatpush1.msra.mxu0 0.0
        %558 = vmatprep.mubr.f32.mxu0 0.0
        %559 = vmatmul.mubr.f32.gmra.mrb[0].mxu0 %v412
        %v560 = vpop.f32.mrb[0].mxu0
        %v561 = vadd.f32 %v482, %v560
        %v562 = vpop.f32.mrb[0].mxu0
        %v563 = vadd.f32 %v486, %v562
        %564 = vdwg.mxu0
        %565 = vmatprep.subr.mxu0 0.0
        %566 = vmatpush1.msra.mxu0 %v431
        %567 = vmatprep.subr.mxu0 0.0
        %568 = vmatpush1.msra.mxu0 %v434
        %569 = vmatprep.subr.mxu0 0.0
        %570 = vmatpush1.msra.mxu0 %v437
        %571 = vmatprep.subr.mxu0 0.0
        %572 = vmatpush1.msra.mxu0 %v440
        %573 = vmatprep.subr.mxu0 0.0
        %574 = vmatpush1.msra.mxu0 %v443
        %575 = vmatprep.subr.mxu0 0.0
        %576 = vmatpush1.msra.mxu0 %v446
        %577 = vmatprep.subr.mxu0 0.0
        %578 = vmatpush1.msra.mxu0 %v449
        %579 = vmatprep.subr.mxu0 0.0
        %580 = vmatpush1.msra.mxu0 %v452
        %581 = vmatprep.subr.mxu0 0.0
        %582 = vmatpush1.msra.mxu0 %v455
        %583 = vmatprep.subr.mxu0 0.0
        %584 = vmatpush1.msra.mxu0 %v458
        %585 = vmatprep.subr.mxu0 0.0
        %586 = vmatpush1.msra.mxu0 %v461
        %587 = vmatprep.subr.mxu0 0.0
        %588 = vmatpush1.msra.mxu0 %v464
        %589 = vmatprep.subr.mxu0 0.0
        %590 = vmatpush1.msra.mxu0 %v467
        %591 = vmatprep.subr.mxu0 0.0
        %592 = vmatpush1.msra.mxu0 %v470
        %593 = vmatprep.subr.mxu0 0.0
        %594 = vmatpush1.msra.mxu0 %v473
        %595 = vmatprep.subr.mxu0 0.0
        %596 = vmatpush1.msra.mxu0 %v476
        %597 = vmatprep.subr.mxu0 0.0
        %598 = vmatpush1.msra.mxu0 0.0
        %599 = vmatprep.subr.mxu0 0.0
        %600 = vmatpush1.msra.mxu0 0.0
        %601 = vmatprep.subr.mxu0 0.0
        %602 = vmatpush1.msra.mxu0 0.0
        %603 = vmatprep.subr.mxu0 0.0
        %604 = vmatpush1.msra.mxu0 0.0
        %605 = vmatprep.subr.mxu0 0.0
        %606 = vmatpush1.msra.mxu0 0.0
        %607 = vmatprep.subr.mxu0 0.0
        %608 = vmatpush1.msra.mxu0 0.0
        %609 = vmatprep.subr.mxu0 0.0
        %610 = vmatpush1.msra.mxu0 0.0
        %611 = vmatprep.subr.mxu0 0.0
        %612 = vmatpush1.msra.mxu0 0.0
        %613 = vmatprep.subr.mxu0 0.0
        %614 = vmatpush1.msra.mxu0 0.0
        %615 = vmatprep.subr.mxu0 0.0
        %616 = vmatpush1.msra.mxu0 0.0
        %617 = vmatprep.subr.mxu0 0.0
        %618 = vmatpush1.msra.mxu0 0.0
        %619 = vmatprep.subr.mxu0 0.0
        %620 = vmatpush1.msra.mxu0 0.0
        %621 = vmatprep.subr.mxu0 0.0
        %622 = vmatpush1.msra.mxu0 0.0
        %623 = vmatprep.subr.mxu0 0.0
        %624 = vmatpush1.msra.mxu0 0.0
        %625 = vmatprep.subr.mxu0 0.0
        %626 = vmatpush1.msra.mxu0 0.0
        %627 = vmatprep.subr.mxu0 0.0
        %628 = vmatpush1.msra.mxu0 0.0
        %629 = vmatprep.mubr.f32.mxu0 0.0
        %630 = vmatmul.mubr.f32.gmra.mrb[0].mxu0 %v412
        %v631 = vpop.f32.mrb[0].mxu0
        %v632 = vadd.f32 %v490, %v631
        %v633 = vpop.f32.mrb[0].mxu0
        %634 = vdwg.mxu0
        %635 = vmatprep.subr.mxu0 %v430
        %636 = vmatpush1.msra.mxu0 %v429
        %637 = vmatprep.subr.mxu0 %v433
        %638 = vmatpush1.msra.mxu0 %v432
        %639 = vmatprep.subr.mxu0 %v436
        %640 = vmatpush1.msra.mxu0 %v435
        %641 = vmatprep.subr.mxu0 %v439
        %642 = vmatpush1.msra.mxu0 %v438
        %643 = vmatprep.subr.mxu0 %v442
        %644 = vmatpush1.msra.mxu0 %v441
        %645 = vmatprep.subr.mxu0 %v445
        %646 = vmatpush1.msra.mxu0 %v444
        %647 = vmatprep.subr.mxu0 %v448
        %648 = vmatpush1.msra.mxu0 %v447
        %649 = vmatprep.subr.mxu0 %v451
        %650 = vmatpush1.msra.mxu0 %v450
        %651 = vmatprep.subr.mxu0 %v454
        %652 = vmatpush1.msra.mxu0 %v453
        %653 = vmatprep.subr.mxu0 %v457
        %654 = vmatpush1.msra.mxu0 %v456
        %655 = vmatprep.subr.mxu0 %v460
        %656 = vmatpush1.msra.mxu0 %v459
        %657 = vmatprep.subr.mxu0 %v463
        %658 = vmatpush1.msra.mxu0 %v462
        %659 = vmatprep.subr.mxu0 %v466
        %660 = vmatpush1.msra.mxu0 %v465
        %661 = vmatprep.subr.mxu0 %v469
        %662 = vmatpush1.msra.mxu0 %v468
        %663 = vmatprep.subr.mxu0 %v472
        %664 = vmatpush1.msra.mxu0 %v471
        %665 = vmatprep.subr.mxu0 %v475
        %666 = vmatpush1.msra.mxu0 %v474
        %667 = vmatprep.subr.mxu0 0.0
        %668 = vmatpush1.msra.mxu0 0.0
        %669 = vmatprep.subr.mxu0 0.0
        %670 = vmatpush1.msra.mxu0 0.0
        %671 = vmatprep.subr.mxu0 0.0
        %672 = vmatpush1.msra.mxu0 0.0
        %673 = vmatprep.subr.mxu0 0.0
        %674 = vmatpush1.msra.mxu0 0.0
        %675 = vmatprep.subr.mxu0 0.0
        %676 = vmatpush1.msra.mxu0 0.0
        %677 = vmatprep.subr.mxu0 0.0
        %678 = vmatpush1.msra.mxu0 0.0
        %679 = vmatprep.subr.mxu0 0.0
        %680 = vmatpush1.msra.mxu0 0.0
        %681 = vmatprep.subr.mxu0 0.0
        %682 = vmatpush1.msra.mxu0 0.0
        %683 = vmatprep.subr.mxu0 0.0
        %684 = vmatpush1.msra.mxu0 0.0
        %685 = vmatprep.subr.mxu0 0.0
        %686 = vmatpush1.msra.mxu0 0.0
        %687 = vmatprep.subr.mxu0 0.0
        %688 = vmatpush1.msra.mxu0 0.0
        %689 = vmatprep.subr.mxu0 0.0
        %690 = vmatpush1.msra.mxu0 0.0
        %691 = vmatprep.subr.mxu0 0.0
        %692 = vmatpush1.msra.mxu0 0.0
        %693 = vmatprep.subr.mxu0 0.0
        %694 = vmatpush1.msra.mxu0 0.0
        %695 = vmatprep.subr.mxu0 0.0
        %696 = vmatpush1.msra.mxu0 0.0
        %697 = vmatprep.subr.mxu0 0.0
        %698 = vmatpush1.msra.mxu0 0.0
        %699 = vmatprep.mubr.f32.mxu0 0.0
        %700 = vmatmul.mubr.f32.gmra.mrb[0].mxu0 %v421
        %v701 = vpop.f32.mrb[0].mxu0
        %v702 = vpop.f32.mrb[0].mxu0
        %v703 = vadd.f32 %v486, %v702
        %704 = vmatprep.mubr.f32.mxu0 0.0
        %705 = vmatmul.mubr.f32.gmra.mrb[0].mxu0 %v422
        %v706 = vpop.f32.mrb[0].mxu0
        %v707 = vpop.f32.mrb[0].mxu0
        %v708 = vadd.f32 %v486, %v707
        %709 = vmatprep.mubr.f32.mxu0 0.0
        %710 = vmatmul.mubr.f32.gmra.mrb[0].mxu0 %v423
        %v711 = vpop.f32.mrb[0].mxu0
        %v712 = vpop.f32.mrb[0].mxu0
        %v713 = vadd.f32 %v486, %v712
        %714 = vmatprep.mubr.f32.mxu0 0.0
        %715 = vmatmul.mubr.f32.gmra.mrb[0].mxu0 %v424
        %v716 = vpop.f32.mrb[0].mxu0
        %v717 = vpop.f32.mrb[0].mxu0
        %v718 = vadd.f32 %v486, %v717
        %719 = vmatprep.mubr.f32.mxu0 0.0
        %720 = vmatmul.mubr.f32.gmra.mrb[0].mxu0 %v425
        %v721 = vpop.f32.mrb[0].mxu0
        %v722 = vpop.f32.mrb[0].mxu0
        %v723 = vadd.f32 %v486, %v722
        %724 = vmatprep.mubr.f32.mxu0 0.0
        %725 = vmatmul.mubr.f32.gmra.mrb[0].mxu0 %v426
        %v726 = vpop.f32.mrb[0].mxu0
        %v727 = vpop.f32.mrb[0].mxu0
        %v728 = vadd.f32 %v486, %v727
        %729 = vmatprep.mubr.f32.mxu0 0.0
        %730 = vmatmul.mubr.f32.gmra.mrb[0].mxu0 %v427
        %v731 = vpop.f32.mrb[0].mxu0
        %v732 = vpop.f32.mrb[0].mxu0
        %v733 = vadd.f32 %v486, %v732
        %734 = vmatprep.mubr.f32.mxu0 0.0
        %735 = vmatmul.mubr.f32.gmra.mrb[0].mxu0 %v428
        %v736 = vpop.f32.mrb[0].mxu0
        %v737 = vpop.f32.mrb[0].mxu0
        %v738 = vadd.f32 %v486, %v737
        %739 = vdwg.mxu0
        %740 = vmatprep.subr.mxu0 0.0
        %741 = vmatpush1.msra.mxu0 %v431
        %742 = vmatprep.subr.mxu0 0.0
        %743 = vmatpush1.msra.mxu0 %v434
        %744 = vmatprep.subr.mxu0 0.0
        %745 = vmatpush1.msra.mxu0 %v437
        %746 = vmatprep.subr.mxu0 0.0
        %747 = vmatpush1.msra.mxu0 %v440
        %748 = vmatprep.subr.mxu0 0.0
        %749 = vmatpush1.msra.mxu0 %v443
        %750 = vmatprep.subr.mxu0 0.0
        %751 = vmatpush1.msra.mxu0 %v446
        %752 = vmatprep.subr.mxu0 0.0
        %753 = vmatpush1.msra.mxu0 %v449
        %754 = vmatprep.subr.mxu0 0.0
        %755 = vmatpush1.msra.mxu0 %v452
        %756 = vmatprep.subr.mxu0 0.0
        %757 = vmatpush1.msra.mxu0 %v455
        %758 = vmatprep.subr.mxu0 0.0
        %759 = vmatpush1.msra.mxu0 %v458
        %760 = vmatprep.subr.mxu0 0.0
        %761 = vmatpush1.msra.mxu0 %v461
        %762 = vmatprep.subr.mxu0 0.0
        %763 = vmatpush1.msra.mxu0 %v464
        %764 = vmatprep.subr.mxu0 0.0
        %765 = vmatpush1.msra.mxu0 %v467
        %766 = vmatprep.subr.mxu0 0.0
        %767 = vmatpush1.msra.mxu0 %v470
        %768 = vmatprep.subr.mxu0 0.0
        %769 = vmatpush1.msra.mxu0 %v473
        %770 = vmatprep.subr.mxu0 0.0
        %771 = vmatpush1.msra.mxu0 %v476
        %772 = vmatprep.subr.mxu0 0.0
        %773 = vmatpush1.msra.mxu0 0.0
        %774 = vmatprep.subr.mxu0 0.0
        %775 = vmatpush1.msra.mxu0 0.0
        %776 = vmatprep.subr.mxu0 0.0
        %777 = vmatpush1.msra.mxu0 0.0
        %778 = vmatprep.subr.mxu0 0.0
        %779 = vmatpush1.msra.mxu0 0.0
        %780 = vmatprep.subr.mxu0 0.0
        %781 = vmatpush1.msra.mxu0 0.0
        %782 = vmatprep.subr.mxu0 0.0
        %783 = vmatpush1.msra.mxu0 0.0
        %784 = vmatprep.subr.mxu0 0.0
        %785 = vmatpush1.msra.mxu0 0.0
        %786 = vmatprep.subr.mxu0 0.0
        %787 = vmatpush1.msra.mxu0 0.0
        %788 = vmatprep.subr.mxu0 0.0
        %789 = vmatpush1.msra.mxu0 0.0
        %790 = vmatprep.subr.mxu0 0.0
        %791 = vmatpush1.msra.mxu0 0.0
        %792 = vmatprep.subr.mxu0 0.0
        %793 = vmatpush1.msra.mxu0 0.0
        %794 = vmatprep.subr.mxu0 0.0
        %795 = vmatpush1.msra.mxu0 0.0
        %796 = vmatprep.subr.mxu0 0.0
        %797 = vmatpush1.msra.mxu0 0.0
        %798 = vmatprep.subr.mxu0 0.0
        %799 = vmatpush1.msra.mxu0 0.0
        %800 = vmatprep.subr.mxu0 0.0
        %801 = vmatpush1.msra.mxu0 0.0
        %802 = vmatprep.subr.mxu0 0.0
        %803 = vmatpush1.msra.mxu0 0.0
        %804 = vmatprep.mubr.f32.mxu0 0.0
        %805 = vmatmul.mubr.f32.gmra.mrb[0].mxu0 %v421
        %v806 = vpop.f32.mrb[0].mxu0
        %v807 = vadd.f32 %v490, %v806
        %v808 = vpop.f32.mrb[0].mxu0
        %809 = vmatprep.mubr.f32.mxu0 0.0
        %810 = vmatmul.mubr.f32.gmra.mrb[0].mxu0 %v422
        %v811 = vpop.f32.mrb[0].mxu0
        %v812 = vadd.f32 %v490, %v811
        %v813 = vpop.f32.mrb[0].mxu0
        %814 = vmatprep.mubr.f32.mxu0 0.0
        %815 = vmatmul.mubr.f32.gmra.mrb[0].mxu0 %v423
        %v816 = vpop.f32.mrb[0].mxu0
        %v817 = vadd.f32 %v490, %v816
        %v818 = vpop.f32.mrb[0].mxu0
        %819 = vmatprep.mubr.f32.mxu0 0.0
        %820 = vmatmul.mubr.f32.gmra.mrb[0].mxu0 %v424
        %v821 = vpop.f32.mrb[0].mxu0
        %v822 = vadd.f32 %v490, %v821
        %v823 = vpop.f32.mrb[0].mxu0
        %824 = vmatprep.mubr.f32.mxu0 0.0
        %825 = vmatmul.mubr.f32.gmra.mrb[0].mxu0 %v425
        %v826 = vpop.f32.mrb[0].mxu0
        %v827 = vadd.f32 %v490, %v826
        %v828 = vpop.f32.mrb[0].mxu0
        %829 = vmatprep.mubr.f32.mxu0 0.0
        %830 = vmatmul.mubr.f32.gmra.mrb[0].mxu0 %v426
        %v831 = vpop.f32.mrb[0].mxu0
        %v832 = vadd.f32 %v490, %v831
        %v833 = vpop.f32.mrb[0].mxu0
        %834 = vmatprep.mubr.f32.mxu0 0.0
        %835 = vmatmul.mubr.f32.gmra.mrb[0].mxu0 %v427
        %v836 = vpop.f32.mrb[0].mxu0
        %v837 = vadd.f32 %v490, %v836
        %v838 = vpop.f32.mrb[0].mxu0
        %839 = vmatprep.mubr.f32.mxu0 0.0
        %840 = vmatmul.mubr.f32.gmra.mrb[0].mxu0 %v428
        %v841 = vpop.f32.mrb[0].mxu0
        %v842 = vadd.f32 %v490, %v841
        %v843 = vpop.f32.mrb[0].mxu0
        %844 = vdwg.mxu0
        %v845 = vld [vmem:[%s5] sm:$0xff]
        %v846 = vld [vmem:[%s5 + $0x8] sm:$0xff]
        %v847 = vld [vmem:[%s5 + $0x10] sm:$0xff]
        %v848 = vld [vmem:[%s5 + $0x18] sm:$0xff]
        %v849 = vld [vmem:[%s5 + $0x20] sm:$0xff]
        %v850 = vld [vmem:[%s5 + $0x28] sm:$0xff]
        %v851 = vld [vmem:[%s5 + $0x30] sm:$0xff]
        %v852 = vld [vmem:[%s5 + $0x38] sm:$0xff]
        %v853 = vld [vmem:[%s5 + $0x40] sm:$0xff]
        %v854 = vld [vmem:[%s5 + $0x48] sm:$0xff]
        %v855 = vld [vmem:[%s5 + $0x50] sm:$0xff]
        %v856 = vld [vmem:[%s5 + $0x58] sm:$0xff]
        %v857 = vld [vmem:[%s5 + $0x60] sm:$0xff]
        %v858 = vld [vmem:[%s5 + $0x68] sm:$0xff]
        %v859 = vld [vmem:[%s5 + $0x70] sm:$0xff]
        %v860 = vld [vmem:[%s5 + $0x78] sm:$0xff]
        %v861 = vld [vmem:[%s6] sm:$0xf]
        %v862 = vmul.f32 %v563, %v561
        %863 = vmatprep.subr.mxu0 0.0
        %864 = vmatpush1.msra.mxu0 %v845
        %865 = vmatprep.subr.mxu0 0.0
        %866 = vmatpush1.msra.mxu0 %v846
        %867 = vmatprep.subr.mxu0 0.0
        %868 = vmatpush1.msra.mxu0 %v847
        %869 = vmatprep.subr.mxu0 0.0
        %870 = vmatpush1.msra.mxu0 %v848
        %871 = vmatprep.subr.mxu0 0.0
        %872 = vmatpush1.msra.mxu0 %v849
        %873 = vmatprep.subr.mxu0 0.0
        %874 = vmatpush1.msra.mxu0 %v850
        %875 = vmatprep.subr.mxu0 0.0
        %876 = vmatpush1.msra.mxu0 %v851
        %877 = vmatprep.subr.mxu0 0.0
        %878 = vmatpush1.msra.mxu0 %v852
        %879 = vmatprep.subr.mxu0 0.0
        %880 = vmatpush1.msra.mxu0 %v853
        %881 = vmatprep.subr.mxu0 0.0
        %882 = vmatpush1.msra.mxu0 %v854
        %883 = vmatprep.subr.mxu0 0.0
        %884 = vmatpush1.msra.mxu0 %v855
        %885 = vmatprep.subr.mxu0 0.0
        %886 = vmatpush1.msra.mxu0 %v856
        %887 = vmatprep.subr.mxu0 0.0
        %888 = vmatpush1.msra.mxu0 %v857
        %889 = vmatprep.subr.mxu0 0.0
        %890 = vmatpush1.msra.mxu0 %v858
        %891 = vmatprep.subr.mxu0 0.0
        %892 = vmatpush1.msra.mxu0 %v859
        %893 = vmatprep.subr.mxu0 0.0
        %894 = vmatpush1.msra.mxu0 %v860
        %895 = vmatprep.subr.mxu0 0.0
        %896 = vmatpush1.msra.mxu0 0.0
        %897 = vmatprep.subr.mxu0 0.0
        %898 = vmatpush1.msra.mxu0 0.0
        %899 = vmatprep.subr.mxu0 0.0
        %900 = vmatpush1.msra.mxu0 0.0
        %901 = vmatprep.subr.mxu0 0.0
        %902 = vmatpush1.msra.mxu0 0.0
        %903 = vmatprep.subr.mxu0 0.0
        %904 = vmatpush1.msra.mxu0 0.0
        %905 = vmatprep.subr.mxu0 0.0
        %906 = vmatpush1.msra.mxu0 0.0
        %907 = vmatprep.subr.mxu0 0.0
        %908 = vmatpush1.msra.mxu0 0.0
        %909 = vmatprep.subr.mxu0 0.0
        %910 = vmatpush1.msra.mxu0 0.0
        %911 = vmatprep.subr.mxu0 0.0
        %912 = vmatpush1.msra.mxu0 0.0
        %913 = vmatprep.subr.mxu0 0.0
        %914 = vmatpush1.msra.mxu0 0.0
        %915 = vmatprep.subr.mxu0 0.0
        %916 = vmatpush1.msra.mxu0 0.0
        %917 = vmatprep.subr.mxu0 0.0
        %918 = vmatpush1.msra.mxu0 0.0
        %919 = vmatprep.subr.mxu0 0.0
        %920 = vmatpush1.msra.mxu0 0.0
        %921 = vmatprep.subr.mxu0 0.0
        %922 = vmatpush1.msra.mxu0 0.0
        %923 = vmatprep.subr.mxu0 0.0
        %924 = vmatpush1.msra.mxu0 0.0
        %925 = vmatprep.subr.mxu0 0.0
        %926 = vmatpush1.msra.mxu0 0.0
        %927 = vmatprep.mubr.f32.mxu0 0.0
        %928 = vmatmul.mubr.f32.gmra.mrb[0].mxu0 %v862
        %v929 = vpop.f32.mrb[0].mxu0
        %v930 = vadd.f32 0.0, %v929
        %v931 = vpop.f32.mrb[0].mxu0
        %932 = vdwg.mxu0
        %v933 = vmul.f32 %v930, 0.17677669
        %v934 = vlaneseq
        %v935 = vshrl.u32 %v934, 7
        %v936 = vsub.s32 0, %v935
        %v937 = vrot.slane %v561, %v936
        %v938 = vmul.f32 %v703, %v937
        %v939 = vmul.f32 %v708, %v937
        %v940 = vmul.f32 %v713, %v937
        %v941 = vmul.f32 %v718, %v937
        %v942 = vmul.f32 %v723, %v937
        %v943 = vmul.f32 %v728, %v937
        %v944 = vmul.f32 %v733, %v937
        %v945 = vmul.f32 %v738, %v937
        %946 = vmatprep.subr.mxu0 0.0
        %947 = vmatpush1.msra.mxu0 %v845
        %948 = vmatprep.subr.mxu0 0.0
        %949 = vmatpush1.msra.mxu0 %v846
        %950 = vmatprep.subr.mxu0 0.0
        %951 = vmatpush1.msra.mxu0 %v847
        %952 = vmatprep.subr.mxu0 0.0
        %953 = vmatpush1.msra.mxu0 %v848
        %954 = vmatprep.subr.mxu0 0.0
        %955 = vmatpush1.msra.mxu0 %v849
        %956 = vmatprep.subr.mxu0 0.0
        %957 = vmatpush1.msra.mxu0 %v850
        %958 = vmatprep.subr.mxu0 0.0
        %959 = vmatpush1.msra.mxu0 %v851
        %960 = vmatprep.subr.mxu0 0.0
        %961 = vmatpush1.msra.mxu0 %v852
        %962 = vmatprep.subr.mxu0 0.0
        %963 = vmatpush1.msra.mxu0 %v853
        %964 = vmatprep.subr.mxu0 0.0
        %965 = vmatpush1.msra.mxu0 %v854
        %966 = vmatprep.subr.mxu0 0.0
        %967 = vmatpush1.msra.mxu0 %v855
        %968 = vmatprep.subr.mxu0 0.0
        %969 = vmatpush1.msra.mxu0 %v856
        %970 = vmatprep.subr.mxu0 0.0
        %971 = vmatpush1.msra.mxu0 %v857
        %972 = vmatprep.subr.mxu0 0.0
        %973 = vmatpush1.msra.mxu0 %v858
        %974 = vmatprep.subr.mxu0 0.0
        %975 = vmatpush1.msra.mxu0 %v859
        %976 = vmatprep.subr.mxu0 0.0
        %977 = vmatpush1.msra.mxu0 %v860
        %978 = vmatprep.subr.mxu0 0.0
        %979 = vmatpush1.msra.mxu0 0.0
        %980 = vmatprep.subr.mxu0 0.0
        %981 = vmatpush1.msra.mxu0 0.0
        %982 = vmatprep.subr.mxu0 0.0
        %983 = vmatpush1.msra.mxu0 0.0
        %984 = vmatprep.subr.mxu0 0.0
        %985 = vmatpush1.msra.mxu0 0.0
        %986 = vmatprep.subr.mxu0 0.0
        %987 = vmatpush1.msra.mxu0 0.0
        %988 = vmatprep.subr.mxu0 0.0
        %989 = vmatpush1.msra.mxu0 0.0
        %990 = vmatprep.subr.mxu0 0.0
        %991 = vmatpush1.msra.mxu0 0.0
        %992 = vmatprep.subr.mxu0 0.0
        %993 = vmatpush1.msra.mxu0 0.0
        %994 = vmatprep.subr.mxu0 0.0
        %995 = vmatpush1.msra.mxu0 0.0
        %996 = vmatprep.subr.mxu0 0.0
        %997 = vmatpush1.msra.mxu0 0.0
        %998 = vmatprep.subr.mxu0 0.0
        %999 = vmatpush1.msra.mxu0 0.0
        %1000 = vmatprep.subr.mxu0 0.0
        %1001 = vmatpush1.msra.mxu0 0.0
        %1002 = vmatprep.subr.mxu0 0.0
        %1003 = vmatpush1.msra.mxu0 0.0
        %1004 = vmatprep.subr.mxu0 0.0
        %1005 = vmatpush1.msra.mxu0 0.0
        %1006 = vmatprep.subr.mxu0 0.0
        %1007 = vmatpush1.msra.mxu0 0.0
        %1008 = vmatprep.subr.mxu0 0.0
        %1009 = vmatpush1.msra.mxu0 0.0
        %1010 = vmatprep.mubr.f32.mxu0 0.0
        %1011 = vmatmul.mubr.f32.gmra.mrb[0].mxu0 %v938
        %v1012 = vpop.f32.mrb[0].mxu0
        %v1013 = vadd.f32 0.0, %v1012
        %v1014 = vpop.f32.mrb[0].mxu0
        %1015 = vmatprep.mubr.f32.mxu0 0.0
        %1016 = vmatmul.mubr.f32.gmra.mrb[0].mxu0 %v939
        %v1017 = vpop.f32.mrb[0].mxu0
        %v1018 = vadd.f32 0.0, %v1017
        %v1019 = vpop.f32.mrb[0].mxu0
        %1020 = vmatprep.mubr.f32.mxu0 0.0
        %1021 = vmatmul.mubr.f32.gmra.mrb[0].mxu0 %v940
        %v1022 = vpop.f32.mrb[0].mxu0
        %v1023 = vadd.f32 0.0, %v1022
        %v1024 = vpop.f32.mrb[0].mxu0
        %1025 = vmatprep.mubr.f32.mxu0 0.0
        %1026 = vmatmul.mubr.f32.gmra.mrb[0].mxu0 %v941
        %v1027 = vpop.f32.mrb[0].mxu0
        %v1028 = vadd.f32 0.0, %v1027
        %v1029 = vpop.f32.mrb[0].mxu0
        %1030 = vmatprep.mubr.f32.mxu0 0.0
        %1031 = vmatmul.mubr.f32.gmra.mrb[0].mxu0 %v942
        %v1032 = vpop.f32.mrb[0].mxu0
        %v1033 = vadd.f32 0.0, %v1032
        %v1034 = vpop.f32.mrb[0].mxu0
        %1035 = vmatprep.mubr.f32.mxu0 0.0
        %1036 = vmatmul.mubr.f32.gmra.mrb[0].mxu0 %v943
        %v1037 = vpop.f32.mrb[0].mxu0
        %v1038 = vadd.f32 0.0, %v1037
        %v1039 = vpop.f32.mrb[0].mxu0
        %1040 = vmatprep.mubr.f32.mxu0 0.0
        %1041 = vmatmul.mubr.f32.gmra.mrb[0].mxu0 %v944
        %v1042 = vpop.f32.mrb[0].mxu0
        %v1043 = vadd.f32 0.0, %v1042
        %v1044 = vpop.f32.mrb[0].mxu0
        %1045 = vmatprep.mubr.f32.mxu0 0.0
        %1046 = vmatmul.mubr.f32.gmra.mrb[0].mxu0 %v945
        %v1047 = vpop.f32.mrb[0].mxu0
        %v1048 = vadd.f32 0.0, %v1047
        %v1049 = vpop.f32.mrb[0].mxu0
        %1050 = vdwg.mxu0
        %v1051 = vmul.f32 %v1013, 0.17677669
        %v1052 = vmul.f32 %v1018, 0.17677669
        %v1053 = vmul.f32 %v1023, 0.17677669
        %v1054 = vmul.f32 %v1028, 0.17677669
        %v1055 = vmul.f32 %v1033, 0.17677669
        %v1056 = vmul.f32 %v1038, 0.17677669
        %v1057 = vmul.f32 %v1043, 0.17677669
        %v1058 = vmul.f32 %v1048, 0.17677669
        %vm1059 = vcmask 31744
        %v1060 = vsel %vm1059, %v1051, -inf
        %v1061 = vsel %vm1059, %v1052, -inf
        %v1062 = vsel %vm1059, %v1053, -inf
        %v1063 = vsel %vm1059, %v1054, -inf
        %v1064 = vsel %vm1059, %v1055, -inf
        %v1065 = vmax.f32 %v1060, %v1064
        %v1066 = vsel %vm1059, %v1056, -inf
        %v1067 = vmax.f32 %v1061, %v1066
        %v1068 = vsel %vm1059, %v1057, -inf
        %v1069 = vmax.f32 %v1062, %v1068
        %v1070 = vsel %vm1059, %v1058, -inf
        %v1071 = vmax.f32 %v1063, %v1070
        %v1072 = vmax.f32 %v1065, %v1067
        %v1073 = vmax.f32 %v1069, %v1071
        %v1074 = vmax.f32 %v1072, %v1073
        %v1075 = vrot.slane %v1074, 4
        %v1076 = vmax.f32 %v1074, %v1075
        %v1077 = vrot.slane %v1076, 2
        %v1078 = vmax.f32 %v1076, %v1077
        %v1079 = vrot.slane %v1078, 1
        %v1080 = vmax.f32 %v1078, %v1079
        %v1081 = vmax.f32 %v1080, %v933
        %v1082 = vsub.f32 %v933, %v1081
        %v1083 = vmul.f32 %v1082, 1.442695
        %v1084 = vpow.pop %v1083
        %v1085 = vlaneseq
        %v1086 = vshrl.u32 %v1085, 7
        %v1087 = vsub.s32 0, %v1086
        %v1088 = vrot.slane %v1081, %v1087
        %v1089 = vsub.f32 %v1051, %v1088
        %v1090 = vsub.f32 %v1052, %v1088
        %v1091 = vsub.f32 %v1053, %v1088
        %v1092 = vsub.f32 %v1054, %v1088
        %v1093 = vsub.f32 %v1055, %v1088
        %v1094 = vsub.f32 %v1056, %v1088
        %v1095 = vsub.f32 %v1057, %v1088
        %v1096 = vsub.f32 %v1058, %v1088
        %v1097 = vmul.f32 %v1089, 1.442695
        %v1098 = vpow.pop %v1097
        %v1099 = vmul.f32 %v1090, 1.442695
        %v1100 = vpow.pop %v1099
        %v1101 = vmul.f32 %v1091, 1.442695
        %v1102 = vpow.pop %v1101
        %v1103 = vmul.f32 %v1092, 1.442695
        %v1104 = vpow.pop %v1103
        %v1105 = vmul.f32 %v1093, 1.442695
        %v1106 = vpow.pop %v1105
        %v1107 = vmul.f32 %v1094, 1.442695
        %v1108 = vpow.pop %v1107
        %v1109 = vmul.f32 %v1095, 1.442695
        %v1110 = vpow.pop %v1109
        %v1111 = vmul.f32 %v1096, 1.442695
        %v1112 = vpow.pop %v1111
        %v1113 = vsel %vm1059, %v1098, 0.0
        %v1114 = vsel %vm1059, %v1100, 0.0
        %v1115 = vadd.f32 %v1113, %v1114
        %v1116 = vsel %vm1059, %v1102, 0.0
        %v1117 = vadd.f32 %v1115, %v1116
        %v1118 = vsel %vm1059, %v1104, 0.0
        %v1119 = vadd.f32 %v1117, %v1118
        %v1120 = vsel %vm1059, %v1106, 0.0
        %v1121 = vadd.f32 %v1119, %v1120
        %v1122 = vsel %vm1059, %v1108, 0.0
        %v1123 = vadd.f32 %v1121, %v1122
        %v1124 = vsel %vm1059, %v1110, 0.0
        %v1125 = vadd.f32 %v1123, %v1124
        %v1126 = vsel %vm1059, %v1112, 0.0
        %v1127 = vadd.f32 %v1125, %v1126
        %v1128 = vrot.slane %v1127, 4
        %v1129 = vadd.f32 %v1127, %v1128
        %v1130 = vrot.slane %v1129, 2
        %v1131 = vadd.f32 %v1129, %v1130
        %v1132 = vrot.slane %v1131, 1
        %v1133 = vadd.f32 %v1131, %v1132
        %v1134 = vadd.f32 %v1084, %v1133
        %v1135 = vrcp.pop %v1134
        %v1136 = vmul.f32 %v1084, %v1135
        %v1137 = vlaneseq
        %v1138 = vshrl.u32 %v1137, 7
        %v1139 = vsub.s32 0, %v1138
        %v1140 = vrot.slane %v1135, %v1139
        %v1141 = vmul.f32 %v1098, %v1140
        %v1142 = vmul.f32 %v1100, %v1140
        %v1143 = vmul.f32 %v1102, %v1140
        %v1144 = vmul.f32 %v1104, %v1140
        %v1145 = vmul.f32 %v1106, %v1140
        %v1146 = vmul.f32 %v1108, %v1140
        %v1147 = vmul.f32 %v1110, %v1140
        %v1148 = vmul.f32 %v1112, %v1140
        %v1150 = vsel %vm1059, %v1136, 0
        %vm1152 = vcmask 1043456
        %v1154 = vsel %vm1152, %v861, 0
        %1156 = vmatprep.subr.mxu0 0.0
        %1157 = vmatpush1.msra.mxu0 %v1154
        %1158 = vmatprep.subr.mxu0 0.0
        %1159 = vmatpush1.msra.mxu0 0.0
        %1160 = vmatprep.subr.mxu0 0.0
        %1161 = vmatpush1.msra.mxu0 0.0
        %1162 = vmatprep.subr.mxu0 0.0
        %1163 = vmatpush1.msra.mxu0 0.0
        %1164 = vmatprep.subr.mxu0 0.0
        %1165 = vmatpush1.msra.mxu0 0.0
        %1166 = vmatprep.subr.mxu0 0.0
        %1167 = vmatpush1.msra.mxu0 0.0
        %1168 = vmatprep.subr.mxu0 0.0
        %1169 = vmatpush1.msra.mxu0 0.0
        %1170 = vmatprep.subr.mxu0 0.0
        %1171 = vmatpush1.msra.mxu0 0.0
        %1172 = vmatprep.subr.mxu0 0.0
        %1173 = vmatpush1.msra.mxu0 0.0
        %1174 = vmatprep.subr.mxu0 0.0
        %1175 = vmatpush1.msra.mxu0 0.0
        %1176 = vmatprep.subr.mxu0 0.0
        %1177 = vmatpush1.msra.mxu0 0.0
        %1178 = vmatprep.subr.mxu0 0.0
        %1179 = vmatpush1.msra.mxu0 0.0
        %1180 = vmatprep.subr.mxu0 0.0
        %1181 = vmatpush1.msra.mxu0 0.0
        %1182 = vmatprep.subr.mxu0 0.0
        %1183 = vmatpush1.msra.mxu0 0.0
        %1184 = vmatprep.subr.mxu0 0.0
        %1185 = vmatpush1.msra.mxu0 0.0
        %1186 = vmatprep.subr.mxu0 0.0
        %1187 = vmatpush1.msra.mxu0 0.0
        %1188 = vmatprep.subr.mxu0 0.0
        %1189 = vmatpush1.msra.mxu0 0.0
        %1190 = vmatprep.subr.mxu0 0.0
        %1191 = vmatpush1.msra.mxu0 0.0
        %1192 = vmatprep.subr.mxu0 0.0
        %1193 = vmatpush1.msra.mxu0 0.0
        %1194 = vmatprep.subr.mxu0 0.0
        %1195 = vmatpush1.msra.mxu0 0.0
        %1196 = vmatprep.subr.mxu0 0.0
        %1197 = vmatpush1.msra.mxu0 0.0
        %1198 = vmatprep.subr.mxu0 0.0
        %1199 = vmatpush1.msra.mxu0 0.0
        %1200 = vmatprep.subr.mxu0 0.0
        %1201 = vmatpush1.msra.mxu0 0.0
        %1202 = vmatprep.subr.mxu0 0.0
        %1203 = vmatpush1.msra.mxu0 0.0
        %1204 = vmatprep.subr.mxu0 0.0
        %1205 = vmatpush1.msra.mxu0 0.0
        %1206 = vmatprep.subr.mxu0 0.0
        %1207 = vmatpush1.msra.mxu0 0.0
        %1208 = vmatprep.subr.mxu0 0.0
        %1209 = vmatpush1.msra.mxu0 0.0
        %1210 = vmatprep.subr.mxu0 0.0
        %1211 = vmatpush1.msra.mxu0 0.0
        %1212 = vmatprep.subr.mxu0 0.0
        %1213 = vmatpush1.msra.mxu0 0.0
        %1214 = vmatprep.subr.mxu0 0.0
        %1215 = vmatpush1.msra.mxu0 0.0
        %1216 = vmatprep.subr.mxu0 0.0
        %1217 = vmatpush1.msra.mxu0 0.0
        %1218 = vmatprep.subr.mxu0 0.0
        %1219 = vmatpush1.msra.mxu0 0.0
        %1220 = vmatprep.mubr.f32.mxu0 0.0
        %1221 = vmatmul.mubr.f32.gmra.mrb[0].mxu0 %v1150
        %v1222 = vpop.f32.mrb[0].mxu0
        %v1223 = vadd.f32 0.0, %v1222
        %v1224 = vpop.f32.mrb[0].mxu0
        %1225 = vdwg.mxu0
        %v1226 = vmul.f32 %v1223, %v632
        %v1228 = vsel %vm1059, %v1141, 0
        %v1231 = vsel %vm1059, %v1142, 0
        %v1234 = vsel %vm1059, %v1143, 0
        %v1237 = vsel %vm1059, %v1144, 0
        %v1240 = vsel %vm1059, %v1145, 0
        %v1243 = vsel %vm1059, %v1146, 0
        %v1246 = vsel %vm1059, %v1147, 0
        %v1249 = vsel %vm1059, %v1148, 0
        %1251 = vmatprep.subr.mxu0 0.0
        %1252 = vmatpush1.msra.mxu0 %v1154
        %1253 = vmatprep.subr.mxu0 0.0
        %1254 = vmatpush1.msra.mxu0 0.0
        %1255 = vmatprep.subr.mxu0 0.0
        %1256 = vmatpush1.msra.mxu0 0.0
        %1257 = vmatprep.subr.mxu0 0.0
        %1258 = vmatpush1.msra.mxu0 0.0
        %1259 = vmatprep.subr.mxu0 0.0
        %1260 = vmatpush1.msra.mxu0 0.0
        %1261 = vmatprep.subr.mxu0 0.0
        %1262 = vmatpush1.msra.mxu0 0.0
        %1263 = vmatprep.subr.mxu0 0.0
        %1264 = vmatpush1.msra.mxu0 0.0
        %1265 = vmatprep.subr.mxu0 0.0
        %1266 = vmatpush1.msra.mxu0 0.0
        %1267 = vmatprep.subr.mxu0 0.0
        %1268 = vmatpush1.msra.mxu0 0.0
        %1269 = vmatprep.subr.mxu0 0.0
        %1270 = vmatpush1.msra.mxu0 0.0
        %1271 = vmatprep.subr.mxu0 0.0
        %1272 = vmatpush1.msra.mxu0 0.0
        %1273 = vmatprep.subr.mxu0 0.0
        %1274 = vmatpush1.msra.mxu0 0.0
        %1275 = vmatprep.subr.mxu0 0.0
        %1276 = vmatpush1.msra.mxu0 0.0
        %1277 = vmatprep.subr.mxu0 0.0
        %1278 = vmatpush1.msra.mxu0 0.0
        %1279 = vmatprep.subr.mxu0 0.0
        %1280 = vmatpush1.msra.mxu0 0.0
        %1281 = vmatprep.subr.mxu0 0.0
        %1282 = vmatpush1.msra.mxu0 0.0
        %1283 = vmatprep.subr.mxu0 0.0
        %1284 = vmatpush1.msra.mxu0 0.0
        %1285 = vmatprep.subr.mxu0 0.0
        %1286 = vmatpush1.msra.mxu0 0.0
        %1287 = vmatprep.subr.mxu0 0.0
        %1288 = vmatpush1.msra.mxu0 0.0
        %1289 = vmatprep.subr.mxu0 0.0
        %1290 = vmatpush1.msra.mxu0 0.0
        %1291 = vmatprep.subr.mxu0 0.0
        %1292 = vmatpush1.msra.mxu0 0.0
        %1293 = vmatprep.subr.mxu0 0.0
        %1294 = vmatpush1.msra.mxu0 0.0
        %1295 = vmatprep.subr.mxu0 0.0
        %1296 = vmatpush1.msra.mxu0 0.0
        %1297 = vmatprep.subr.mxu0 0.0
        %1298 = vmatpush1.msra.mxu0 0.0
        %1299 = vmatprep.subr.mxu0 0.0
        %1300 = vmatpush1.msra.mxu0 0.0
        %1301 = vmatprep.subr.mxu0 0.0
        %1302 = vmatpush1.msra.mxu0 0.0
        %1303 = vmatprep.subr.mxu0 0.0
        %1304 = vmatpush1.msra.mxu0 0.0
        %1305 = vmatprep.subr.mxu0 0.0
        %1306 = vmatpush1.msra.mxu0 0.0
        %1307 = vmatprep.subr.mxu0 0.0
        %1308 = vmatpush1.msra.mxu0 0.0
        %1309 = vmatprep.subr.mxu0 0.0
        %1310 = vmatpush1.msra.mxu0 0.0
        %1311 = vmatprep.subr.mxu0 0.0
        %1312 = vmatpush1.msra.mxu0 0.0
        %1313 = vmatprep.subr.mxu0 0.0
        %1314 = vmatpush1.msra.mxu0 0.0
        %1315 = vmatprep.mubr.f32.mxu0 0.0
        %1316 = vmatmul.mubr.f32.gmra.mrb[0].mxu0 %v1228
        %v1317 = vpop.f32.mrb[0].mxu0
        %v1318 = vadd.f32 0.0, %v1317
        %v1319 = vpop.f32.mrb[0].mxu0
        %1320 = vmatprep.mubr.f32.mxu0 0.0
        %1321 = vmatmul.mubr.f32.gmra.mrb[0].mxu0 %v1231
        %v1322 = vpop.f32.mrb[0].mxu0
        %v1323 = vadd.f32 0.0, %v1322
        %v1324 = vpop.f32.mrb[0].mxu0
        %1325 = vmatprep.mubr.f32.mxu0 0.0
        %1326 = vmatmul.mubr.f32.gmra.mrb[0].mxu0 %v1234
        %v1327 = vpop.f32.mrb[0].mxu0
        %v1328 = vadd.f32 0.0, %v1327
        %v1329 = vpop.f32.mrb[0].mxu0
        %1330 = vmatprep.mubr.f32.mxu0 0.0
        %1331 = vmatmul.mubr.f32.gmra.mrb[0].mxu0 %v1237
        %v1332 = vpop.f32.mrb[0].mxu0
        %v1333 = vadd.f32 0.0, %v1332
        %v1334 = vpop.f32.mrb[0].mxu0
        %1335 = vmatprep.mubr.f32.mxu0 0.0
        %1336 = vmatmul.mubr.f32.gmra.mrb[0].mxu0 %v1240
        %v1337 = vpop.f32.mrb[0].mxu0
        %v1338 = vadd.f32 0.0, %v1337
        %v1339 = vpop.f32.mrb[0].mxu0
        %1340 = vmatprep.mubr.f32.mxu0 0.0
        %1341 = vmatmul.mubr.f32.gmra.mrb[0].mxu0 %v1243
        %v1342 = vpop.f32.mrb[0].mxu0
        %v1343 = vadd.f32 0.0, %v1342
        %v1344 = vpop.f32.mrb[0].mxu0
        %1345 = vmatprep.mubr.f32.mxu0 0.0
        %1346 = vmatmul.mubr.f32.gmra.mrb[0].mxu0 %v1246
        %v1347 = vpop.f32.mrb[0].mxu0
        %v1348 = vadd.f32 0.0, %v1347
        %v1349 = vpop.f32.mrb[0].mxu0
        %1350 = vmatprep.mubr.f32.mxu0 0.0
        %1351 = vmatmul.mubr.f32.gmra.mrb[0].mxu0 %v1249
        %v1352 = vpop.f32.mrb[0].mxu0
        %v1353 = vadd.f32 0.0, %v1352
        %v1354 = vpop.f32.mrb[0].mxu0
        %1355 = vdwg.mxu0
        %v1356 = vmul.f32 %v1318, %v807
        %v1357 = vmul.f32 %v1323, %v812
        %v1358 = vmul.f32 %v1328, %v817
        %v1359 = vmul.f32 %v1333, %v822
        %v1360 = vmul.f32 %v1338, %v827
        %v1361 = vmul.f32 %v1343, %v832
        %v1362 = vmul.f32 %v1348, %v837
        %v1363 = vmul.f32 %v1353, %v842
        %v1364 = vadd.f32 %v1356, %v1357
        %v1365 = vadd.f32 %v1364, %v1358
        %v1366 = vadd.f32 %v1365, %v1359
        %v1367 = vadd.f32 %v1366, %v1360
        %v1368 = vadd.f32 %v1367, %v1361
        %v1369 = vadd.f32 %v1368, %v1362
        %v1370 = vadd.f32 %v1369, %v1363
        %v1371 = vrot.slane %v1370, 4
        %v1372 = vadd.f32 %v1370, %v1371
        %v1373 = vrot.slane %v1372, 2
        %v1374 = vadd.f32 %v1372, %v1373
        %v1375 = vrot.slane %v1374, 1
        %v1376 = vadd.f32 %v1374, %v1375
        %v1377 = vadd.f32 %v1226, %v1376
        %v1378 = vld [vmem:[#allocation8] sm:$0xff]
        %v1379 = vld [vmem:[#allocation8 + $0x8] sm:$0xff]
        %v1380 = vld [vmem:[#allocation8 + $0x10] sm:$0xff]
        %v1381 = vld [vmem:[#allocation8 + $0x18] sm:$0xff]
        %v1382 = vld [vmem:[#allocation8 + $0x20] sm:$0xff]
        %v1383 = vld [vmem:[#allocation8 + $0x28] sm:$0xff]
        %v1384 = vld [vmem:[#allocation8 + $0x30] sm:$0xff]
        %v1385 = vld [vmem:[#allocation8 + $0x38] sm:$0xff]
        %v1386 = vld [vmem:[#allocation8 + $0x40] sm:$0xff]
        %v1387 = vld [vmem:[#allocation8 + $0x48] sm:$0xff]
        %v1388 = vld [vmem:[#allocation8 + $0x50] sm:$0xff]
        %v1389 = vld [vmem:[#allocation8 + $0x58] sm:$0xff]
        %v1390 = vld [vmem:[#allocation8 + $0x60] sm:$0xff]
        %v1391 = vld [vmem:[#allocation8 + $0x68] sm:$0xff]
        %v1392 = vld [vmem:[#allocation8 + $0x70] sm:$0xff]
        %v1393 = vld [vmem:[#allocation8 + $0x78] sm:$0xff]
        %v1394 = vld [vmem:[#allocation8 + $0x80] sm:$0xff]
        %v1395 = vld [vmem:[#allocation8 + $0x88] sm:$0xff]
        %v1396 = vld [vmem:[#allocation8 + $0x90] sm:$0xff]
        %v1397 = vld [vmem:[#allocation8 + $0x98] sm:$0xff]
        %v1398 = vld [vmem:[#allocation8 + $0xa0] sm:$0xff]
        %v1399 = vld [vmem:[#allocation8 + $0xa8] sm:$0xff]
        %v1400 = vld [vmem:[#allocation8 + $0xb0] sm:$0xff]
        %v1401 = vld [vmem:[#allocation8 + $0xb8] sm:$0xff]
        %v1402 = vld [vmem:[#allocation8 + $0xc0] sm:$0xff]
        %v1403 = vld [vmem:[#allocation8 + $0xc8] sm:$0xff]
        %v1404 = vld [vmem:[#allocation8 + $0xd0] sm:$0xff]
        %v1405 = vld [vmem:[#allocation8 + $0xd8] sm:$0xff]
        %v1406 = vld [vmem:[#allocation8 + $0xe0] sm:$0xff]
        %v1407 = vld [vmem:[#allocation8 + $0xe8] sm:$0xff]
        %v1408 = vld [vmem:[#allocation8 + $0xf0] sm:$0xff]
        %v1409 = vld [vmem:[#allocation8 + $0xf8] sm:$0xff]
        %v1410 = vld [vmem:[%s8] sm:$0x3]
        %v1412 = vlaneseq
        %v1413 = vshrl.u32 %v1412, 7
        %v1414 = vsub.s32 0, %v1413
        %v1415 = vrot.slane %v1410, %v1414
        %v1416 = vlaneseq
        %v1417 = vshrl.u32 %v1416, 7
        %v1418 = vsub.s32 1, %v1417
        %v1419 = vrot.slane %v1410, %v1418
        %1422 = vmatprep.subr.mxu0 %v1379
        %1423 = vmatpush1.msra.mxu0 %v1378
        %1424 = vmatprep.subr.mxu0 %v1381
        %1425 = vmatpush1.msra.mxu0 %v1380
        %1426 = vmatprep.subr.mxu0 %v1383
        %1427 = vmatpush1.msra.mxu0 %v1382
        %1428 = vmatprep.subr.mxu0 %v1385
        %1429 = vmatpush1.msra.mxu0 %v1384
        %1430 = vmatprep.subr.mxu0 %v1387
        %1431 = vmatpush1.msra.mxu0 %v1386
        %1432 = vmatprep.subr.mxu0 %v1389
        %1433 = vmatpush1.msra.mxu0 %v1388
        %1434 = vmatprep.subr.mxu0 %v1391
        %1435 = vmatpush1.msra.mxu0 %v1390
        %1436 = vmatprep.subr.mxu0 %v1393
        %1437 = vmatpush1.msra.mxu0 %v1392
        %1438 = vmatprep.subr.mxu0 %v1395
        %1439 = vmatpush1.msra.mxu0 %v1394
        %1440 = vmatprep.subr.mxu0 %v1397
        %1441 = vmatpush1.msra.mxu0 %v1396
        %1442 = vmatprep.subr.mxu0 %v1399
        %1443 = vmatpush1.msra.mxu0 %v1398
        %1444 = vmatprep.subr.mxu0 %v1401
        %1445 = vmatpush1.msra.mxu0 %v1400
        %1446 = vmatprep.subr.mxu0 %v1403
        %1447 = vmatpush1.msra.mxu0 %v1402
        %1448 = vmatprep.subr.mxu0 %v1405
        %1449 = vmatpush1.msra.mxu0 %v1404
        %1450 = vmatprep.subr.mxu0 %v1407
        %1451 = vmatpush1.msra.mxu0 %v1406
        %1452 = vmatprep.subr.mxu0 %v1409
        %1453 = vmatpush1.msra.mxu0 %v1408
        %1454 = vmatprep.subr.mxu0 0.0
        %1455 = vmatpush1.msra.mxu0 0.0
        %1456 = vmatprep.subr.mxu0 0.0
        %1457 = vmatpush1.msra.mxu0 0.0
        %1458 = vmatprep.subr.mxu0 0.0
        %1459 = vmatpush1.msra.mxu0 0.0
        %1460 = vmatprep.subr.mxu0 0.0
        %1461 = vmatpush1.msra.mxu0 0.0
        %1462 = vmatprep.subr.mxu0 0.0
        %1463 = vmatpush1.msra.mxu0 0.0
        %1464 = vmatprep.subr.mxu0 0.0
        %1465 = vmatpush1.msra.mxu0 0.0
        %1466 = vmatprep.subr.mxu0 0.0
        %1467 = vmatpush1.msra.mxu0 0.0
        %1468 = vmatprep.subr.mxu0 0.0
        %1469 = vmatpush1.msra.mxu0 0.0
        %1470 = vmatprep.subr.mxu0 0.0
        %1471 = vmatpush1.msra.mxu0 0.0
        %1472 = vmatprep.subr.mxu0 0.0
        %1473 = vmatpush1.msra.mxu0 0.0
        %1474 = vmatprep.subr.mxu0 0.0
        %1475 = vmatpush1.msra.mxu0 0.0
        %1476 = vmatprep.subr.mxu0 0.0
        %1477 = vmatpush1.msra.mxu0 0.0
        %1478 = vmatprep.subr.mxu0 0.0
        %1479 = vmatpush1.msra.mxu0 0.0
        %1480 = vmatprep.subr.mxu0 0.0
        %1481 = vmatpush1.msra.mxu0 0.0
        %1482 = vmatprep.subr.mxu0 0.0
        %1483 = vmatpush1.msra.mxu0 0.0
        %1484 = vmatprep.subr.mxu0 0.0
        %1485 = vmatpush1.msra.mxu0 0.0
        %1486 = vmatprep.mubr.f32.mxu0 0.0
        %1487 = vmatmul.mubr.f32.gmra.mrb[0].mxu0 %v1377
        %v1488 = vpop.f32.mrb[0].mxu0
        %v1489 = vadd.f32 %v1415, %v1488
        %v1490 = vpop.f32.mrb[0].mxu0
        %v1491 = vadd.f32 %v1419, %v1490
        %1492 = vdwg.mxu0
        %v1495 = vcombine.low %v1489, %v1491
        %v1497 = vunpack.c.l.s4 1966171168
        %v1498 = vunpack.c.0.s8 %v1497
        %v1499 = vlaneseq
        %v1500 = vshrl.u32 %v1499, 7
        %v1501 = vsub.s32 %v1498, %v1500
        %v1502 = vrot.slane %v1495, %v1501
        %v1504 = vunpack.c.l.s4 1966171168
        %v1505 = vunpack.c.0.s8 %v1504
        %v1506 = vlaneseq
        %v1507 = vshrl.u32 %v1506, 7
        %v1508 = vsub.s32 %v1505, %v1507
        %v1509 = vrot.slane %v1502, %v1508
        %v1511 = vlaneseq
        %vm1512 = vcmp.ge.s32.totalorder %v1511, 0
        %vm1513 = vcmp.lt.s32.totalorder %v1511, 256
        %vm1514 = vmand %vm1512, %vm1513
        %1515 = vst.msk [vmem:[%s382] sm:$0x3] %vm1514, %v1509
        %s1516 = sand.u32 %s228, 1
        %s1517 = scalar_lea.sflag [#allocation4], %s1516
        %s1518 = sand.u32 %s228, 1
        %s1519 = smul.addr %s1518, 2
        %s1520 = scalar_lea.vmem [#allocation10], %s1519
        // Predicated region
        $region73: #{tpu_custom_call.1} parent=55 // pred_check
          %p1521 = pneg %p238
        $region74: #{tpu_custom_call.1} parent=55 // pred_check_branch
          %1523 = sbr.rel (%p1521) target = $region76
        $region75: #{tpu_custom_call.1} parent=55 // pred_region
          %s1525 = ssub.s32 32, 32
          %1526 = vsyncadd %s1517, %s1525
          %s1527 = smul.addr %s26, 2
          %s1528 = smul.addr %s1527, 16
          %s1529 = scalar_lea.hbm %s9, %s1528
          %s1531 = sshll.u32 %s1520, 4
          %s1532 = int_to_ptr.vmem [resolvable:$true] %s1531
          %1534 = dma.vmem_to_hbm [thread:$0]  %s1532, 32, %s1529, %s1517
        $region76: #{tpu_custom_call.1} parent=55 // pred_fallthru
          _
      $region56: #{tpu_custom_call.1} parent=5 // pred_fallthru
        _
      %p1535 = scmp.le.s32.totalorder 2, %s21
      // Predicated region
      $region77: #{tpu_custom_call.1} parent=5 // pred_check
        %p1536 = pneg %p1535
      $region78: #{tpu_custom_call.1} parent=5 // pred_check_branch
        %1538 = sbr.rel (%p1536) target = $region80
      $region79: #{tpu_custom_call.1} parent=5 // pred_region
        %s1539 = ssub.s32 %s21, 2
        // Predicated region
        $region81: #{tpu_custom_call.1} parent=79 // pred_check
          %p1540 = pneg %p244
        $region82: #{tpu_custom_call.1} parent=79 // pred_check_branch
          %1542 = sbr.rel (%p1540) target = $region84
        $region83: #{tpu_custom_call.1} parent=79 // pred_region
          %s1543 = sand.u32 %s229, 1
          %s1544 = scalar_lea.sflag [#allocation4], %s1543
          %s1545 = sand.u32 %s229, 1
          %s1546 = smul.addr %s1545, 2
          %s1547 = scalar_lea.vmem [#allocation10], %s1546
          %1548 = dma.done %s1544, 32
        $region84: #{tpu_custom_call.1} parent=79 // pred_fallthru
          _
      $region80: #{tpu_custom_call.1} parent=5 // pred_fallthru
        _
    $region6: #{tpu_custom_call.1} parent=1 // loop_footer
      %s25 = sadd.s32 1, %s21
    $region7: #{tpu_custom_call.1} parent=1 // loop_footer_branch
      %20 = sbr.rel target = $region3
    $region8: #{tpu_custom_call.1} parent=1 // loop_exit
      _
    %1549 = vsyncpa [#allocation3], 1
    %s1550 = scalar_lea.sflag [#allocation3], 1
    %1551 = vsyncpa %s1550, 1
    %1552 = vsyncpa [#allocation6], 1
    %1553 = vsyncpa [#allocation9], 1
    %1554 = vsyncpa [#allocation4], 1
    %s1555 = scalar_lea.sflag [#allocation4], 1
    %1556 = vsyncpa %s1555, 1

</llo_original>
